<compile_context>
chip_gen: v6e
topology: v6e:2x2x1
jax: 0.10.0
libtpu: 0.0.40
codegen_flags: <defaults>
</compile_context>

<pallas_src>
import functools

import jax
import jax.numpy as jnp
from jax import lax
from jax.experimental import pallas as pl
from jax.experimental.pallas import tpu as pltpu


# ----------------------------- kernels --------------------------------------


def _layernorm(x, g, b, eps=1e-5):
    mu = jnp.mean(x, axis=-1, keepdims=True)
    var = jnp.mean((x - mu) ** 2, axis=-1, keepdims=True)
    return (x - mu) / jnp.sqrt(var + eps) * g + b


def encoder_stack_kernel(x_ref, wq_ref, wk_ref, wv_ref, wo_ref, bo_ref,
                         g1_ref, b1_ref, wff_ref, bff_ref, wff2_ref, bff2_ref,
                         gffn_ref, bffn_ref, out_ref, head_slab,
                         *, num_heads, kdim):
    """One grid step = (batch element b, encoder layer l).

    The activation lives in out_ref (same output block across the layer axis,
    so it stays VMEM-resident); layer 0 seeds it from the embedding input.
    """
    layer = pl.program_id(1)

    @pl.when(layer == 0)
    def _():
        out_ref[0] = x_ref[0]

    x = out_ref[0]                                   # (S, D) resident activation
    S, D = x.shape

    # Fused per-head projections: one lane-dense (S, D) @ (D, D) each.
    # 1/sqrt(kdim) is already folded into wq at packing time.
    q = jnp.dot(x, wq_ref[0], preferred_element_type=jnp.float32)
    k = jnp.dot(x, wk_ref[0], preferred_element_type=jnp.float32)
    v = jnp.dot(x, wv_ref[0], preferred_element_type=jnp.float32)

    # Additive causal bias (head-invariant, built once per tile).
    row = lax.broadcasted_iota(jnp.int32, (S, S), 0)
    col = lax.broadcasted_iota(jnp.int32, (S, S), 1)
    bias = jnp.where(col > row, jnp.float32(-1e30), jnp.float32(0.0))

    # Per-head scores / softmax / context, written into a (S, D) scratch slab
    # at static column offsets (replaces jnp.concatenate).
    for h in range(num_heads):                       # static unroll
        lo, hi = h * kdim, (h + 1) * kdim
        q_h, k_h, v_h = q[:, lo:hi], k[:, lo:hi], v[:, lo:hi]
        s = lax.dot_general(q_h, k_h, (((1,), (1,)), ((), ())),
                            preferred_element_type=jnp.float32) + bias
        m = jnp.max(s, axis=-1, keepdims=True)
        e = jnp.exp(s - m)
        inv = pl.reciprocal(jnp.sum(e, axis=-1, keepdims=True), approx=True)
        p = e * inv
        head_slab[:, lo:hi] = jnp.dot(p, v_h, preferred_element_type=jnp.float32)

    attn = (jnp.dot(head_slab[...], wo_ref[0],
                    preferred_element_type=jnp.float32) + bo_ref[0])
    add_norm = _layernorm(attn + x, g1_ref[0], b1_ref[0])

    h1 = jnp.dot(add_norm, wff_ref[0], preferred_element_type=jnp.float32) + bff_ref[0]
    h1 = jnp.maximum(h1, 0.0)
    ff = jnp.dot(h1, wff2_ref[0], preferred_element_type=jnp.float32) + bff2_ref[0]
    out_ref[0] = _layernorm(ff + add_norm, gffn_ref[0], bffn_ref[0])


def logits_kernel(x_ref, w_ref, b_ref, out_ref):
    out_ref[...] = (jnp.dot(x_ref[...], w_ref[...],
                            preferred_element_type=jnp.float32) + b_ref[...])


# ----------------------------- wrappers --------------------------------------


def encoder_stack(x, packed, *, num_heads):
    """All encoder layers in one pipelined pallas_call. x: (B, S, D)."""
    B, S, D = x.shape
    L = packed['wq'].shape[0]
    kdim = D // num_heads
    kernel = functools.partial(encoder_stack_kernel,
                               num_heads=num_heads, kdim=kdim)

    def wspec(a):
        # Select layer l's slab; full extent in trailing dims.
        return pl.BlockSpec((1,) + a.shape[1:],
                            lambda b, l, nd=a.ndim: (l,) + (0,) * (nd - 1))

    w_names = ('wq', 'wk', 'wv', 'wo', 'bo', 'g1', 'b1',
               'wff', 'bff', 'wff2', 'bff2', 'gffn', 'bffn')
    w_args = tuple(packed[n] for n in w_names)

    return pl.pallas_call(
        kernel,
        out_shape=jax.ShapeDtypeStruct((B, S, D), jnp.float32),
        grid=(B, L),
        in_specs=([pl.BlockSpec((1, S, D), lambda b, l: (b, 0, 0))]
                  + [wspec(a) for a in w_args]),
        out_specs=pl.BlockSpec((1, S, D), lambda b, l: (b, 0, 0)),
        scratch_shapes=[pltpu.VMEM((S, D), jnp.float32)],
        compiler_params=pltpu.CompilerParams(
            dimension_semantics=("parallel", "arbitrary")),
    )(x, *w_args)


def logits_layer(x2d, w, b):
    """(B*S, D) @ (D, V) + b, flattened M for lane/sublane-dense tiles."""
    M, D = x2d.shape
    V = w.shape[1]
    # TODO(synk): for realistic vocabularies, tile V (multiple-of-128 blocks)
    # with a parallel grid axis instead of a fully-resident (D, V) weight.
    return pl.pallas_call(
        logits_kernel,
        out_shape=jax.ShapeDtypeStruct((M, V), jnp.float32),
        grid=(1,),
        in_specs=[pl.BlockSpec((M, D), lambda i: (0, 0)),
                  pl.BlockSpec((D, V), lambda i: (0, 0)),
                  pl.BlockSpec((1, V), lambda i: (0, 0))],
        out_specs=pl.BlockSpec((M, V), lambda i: (0, 0)),
    )(x2d, w, b)


def transformer_forward(packed, enc_inputs, *, num_heads):
    # TODO(synk): embedding lookup (row gather) stays in plain-JAX glue.
    x = jnp.take(packed['enc_embedding'], enc_inputs, axis=0)   # (B, S, D)
    x = encoder_stack(x, packed, num_heads=num_heads)
    B, S, D = x.shape
    logits2d = logits_layer(x.reshape(B * S, D),
                            packed['w_logits'], packed['b_logits'])
    return logits2d.reshape(B, S, -1)


# ---------------------- deterministic parameter init -------------------------


def init_params(key, *, num_sublayers, model_dim, num_heads, vocab_size):
    kdim = model_dim // num_heads
    keys = iter(jax.random.split(key, 4 + num_sublayers * 8))

    def nrm(shape, scale=0.05):
        return (scale * jax.random.normal(next(keys), shape)).astype(jnp.float32)

    params = {
        'enc_embedding': nrm((vocab_size, model_dim), 1.0),
        'layers': [],
        'w_logits': nrm((model_dim, vocab_size)),
        'b_logits': jnp.zeros((1, vocab_size), jnp.float32),
    }
    for _ in range(num_sublayers):
        params['layers'].append({
            'wq': nrm((num_heads, model_dim, kdim)),
            'wk': nrm((num_heads, model_dim, kdim)),
            'wv': nrm((num_heads, model_dim, kdim)),
            'wo': nrm((model_dim, model_dim)),
            'bo': jnp.zeros((1, model_dim), jnp.float32),
            'g1': jnp.ones((1, model_dim), jnp.float32),
            'b1': jnp.zeros((1, model_dim), jnp.float32),
            'wff': nrm((model_dim, model_dim)),
            'bff': jnp.zeros((1, model_dim), jnp.float32),
            'wff2': nrm((model_dim, model_dim)),
            'bff2': jnp.zeros((1, model_dim), jnp.float32),
            'gffn': jnp.ones((1, model_dim), jnp.float32),
            'bffn': jnp.zeros((1, model_dim), jnp.float32),
        })
    return params


def pack_params(params, *, num_heads):
    """Stack per-layer weights along a leading L axis; fuse per-head QKV
    weights to (D, D); fold 1/sqrt(kdim) into wq."""
    layers = params['layers']
    D = params['enc_embedding'].shape[1]
    kdim = D // num_heads
    scale = 1.0 / jnp.sqrt(jnp.float32(kdim))

    def fuse_heads(w):                               # (H, D, kdim) -> (D, H*kdim)
        return jnp.transpose(w, (1, 0, 2)).reshape(D, num_heads * kdim)

    def stack(name, fn=lambda a: a):
        return jnp.stack([fn(layer[name]) for layer in layers], axis=0)

    return {
        'enc_embedding': params['enc_embedding'],
        'w_logits': params['w_logits'],
        'b_logits': params['b_logits'],
        'wq': stack('wq', lambda w: fuse_heads(w) * scale),
        'wk': stack('wk', fuse_heads),
        'wv': stack('wv', fuse_heads),
        'wo': stack('wo'),  'bo': stack('bo'),
        'g1': stack('g1'),  'b1': stack('b1'),
        'wff': stack('wff'), 'bff': stack('bff'),
        'wff2': stack('wff2'), 'bff2': stack('bff2'),
        'gffn': stack('gffn'), 'bffn': stack('bffn'),
    }


# ------------------------- pure-JAX reference --------------------------------


def reference_forward(params, enc_inputs, *, num_heads):
    x = jnp.take(params['enc_embedding'], enc_inputs, axis=0)
    B, S, D = x.shape
    kd = D // num_heads
    mask = jnp.arange(S)[None, :] > jnp.arange(S)[:, None]

    def ln(y, g, b):
        mu = y.mean(-1, keepdims=True)
        var = ((y - mu) ** 2).mean(-1, keepdims=True)
        return (y - mu) / jnp.sqrt(var + 1e-5) * g + b

    for layer in params['layers']:
        heads = []
        for h in range(num_heads):
            q = x @ layer['wq'][h]
            k = x @ layer['wk'][h]
            v = x @ layer['wv'][h]
            s = jnp.einsum('bsk,btk->bst', q, k) / jnp.sqrt(jnp.float32(kd))
            s = jnp.where(mask[None], -jnp.inf, s)
            p = jax.nn.softmax(s, axis=-1)
            heads.append(jnp.einsum('bst,btk->bsk', p, v))
        cat = jnp.concatenate(heads, axis=-1)
        attn = cat @ layer['wo'] + layer['bo']
        add_norm = ln(attn + x, layer['g1'], layer['b1'])
        h1 = jnp.maximum(add_norm @ layer['wff'] + layer['bff'], 0.0)
        ff = h1 @ layer['wff2'] + layer['bff2']
        x = ln(ff + add_norm, layer['gffn'], layer['bffn'])
    return x @ params['w_logits'] + params['b_logits']


# ----------------------------------- main -------------------------------------


if __name__ == "__main__":
    # Lane-dense demo shapes (model_dim / vocab = 128) but still tiny.
    B, S = 2, 8
    model_dim, num_heads, vocab_size, num_sublayers = 128, 4, 128, 2

    key = jax.random.PRNGKey(0)
    pkey, ikey = jax.random.split(key)
    params = init_params(pkey, num_sublayers=num_sublayers, model_dim=model_dim,
                         num_heads=num_heads, vocab_size=vocab_size)
    packed = pack_params(params, num_heads=num_heads)
    enc_inputs = jax.random.randint(ikey, (B, S), 0, vocab_size, dtype=jnp.int32)

    out = transformer_forward(packed, enc_inputs, num_heads=num_heads)
    out = jax.block_until_ready(out)

    ref = reference_forward(params, enc_inputs, num_heads=num_heads)
    assert out.shape == (B, S, vocab_size)
    # Slightly relaxed tolerance: the kernel uses the EUP approximate
    # reciprocal (pl.reciprocal(..., approx=True)) for the softmax denominator.
    assert jnp.allclose(out, ref, atol=2e-3, rtol=2e-3), "mismatch vs reference"

    print("KERNEL_OK")
</pallas_src>

<mosaic_0001>
module attributes {stable_mosaic.version = 11 : i64} {
  func.func @encoder_stack_kernel(%arg0: i32, %arg1: i32, %arg2: memref<1x8x128xf32, #tpu.memory_space<vmem>>, %arg3: memref<1x128x128xf32, #tpu.memory_space<vmem>>, %arg4: memref<1x128x128xf32, #tpu.memory_space<vmem>>, %arg5: memref<1x128x128xf32, #tpu.memory_space<vmem>>, %arg6: memref<1x128x128xf32, #tpu.memory_space<vmem>>, %arg7: memref<1x1x128xf32, #tpu.memory_space<vmem>>, %arg8: memref<1x1x128xf32, #tpu.memory_space<vmem>>, %arg9: memref<1x1x128xf32, #tpu.memory_space<vmem>>, %arg10: memref<1x128x128xf32, #tpu.memory_space<vmem>>, %arg11: memref<1x1x128xf32, #tpu.memory_space<vmem>>, %arg12: memref<1x128x128xf32, #tpu.memory_space<vmem>>, %arg13: memref<1x1x128xf32, #tpu.memory_space<vmem>>, %arg14: memref<1x1x128xf32, #tpu.memory_space<vmem>>, %arg15: memref<1x1x128xf32, #tpu.memory_space<vmem>>, %arg16: memref<1x8x128xf32, #tpu.memory_space<vmem>>, %arg17: memref<8x128xf32, #tpu.memory_space<vmem>>) attributes {dimension_semantics = [#tpu.dimension_semantics<parallel>, #tpu.dimension_semantics<arbitrary>], iteration_bounds = array<i64: 2, 2>, scalar_prefetch = 0 : i64, scratch_operands = 1 : i64, tpu.core_type = #tpu.core_type<tc>, window_params = [{transform_indices = @transform_0, window_bounds = array<i64: 1, 8, 128>}, {transform_indices = @transform_1, window_bounds = array<i64: 1, 128, 128>}, {transform_indices = @transform_2, window_bounds = array<i64: 1, 128, 128>}, {transform_indices = @transform_3, window_bounds = array<i64: 1, 128, 128>}, {transform_indices = @transform_4, window_bounds = array<i64: 1, 128, 128>}, {transform_indices = @transform_5, window_bounds = array<i64: 1, 1, 128>}, {transform_indices = @transform_6, window_bounds = array<i64: 1, 1, 128>}, {transform_indices = @transform_7, window_bounds = array<i64: 1, 1, 128>}, {transform_indices = @transform_8, window_bounds = array<i64: 1, 128, 128>}, {transform_indices = @transform_9, window_bounds = array<i64: 1, 1, 128>}, {transform_indices = @transform_10, window_bounds = array<i64: 1, 128, 128>}, {transform_indices = @transform_11, window_bounds = array<i64: 1, 1, 128>}, {transform_indices = @transform_12, window_bounds = array<i64: 1, 1, 128>}, {transform_indices = @transform_13, window_bounds = array<i64: 1, 1, 128>}, {transform_indices = @transform_14, window_bounds = array<i64: 1, 8, 128>}]} {
    %c0_i32 = arith.constant 0 : i32
    %0 = arith.cmpi eq, %arg1, %c0_i32 : i32
    %1 = arith.extui %0 : i1 to i32
    %c0_i32_0 = arith.constant 0 : i32
    %2 = arith.cmpi ne, %1, %c0_i32_0 : i32
    scf.if %2 {
      %c0_86 = arith.constant 0 : index
      %c0_87 = arith.constant 0 : index
      %c0_88 = arith.constant 0 : index
      %169 = vector.load %arg2[%c0_86, %c0_87, %c0_88] : memref<1x8x128xf32, #tpu.memory_space<vmem>>, vector<1x8x128xf32>
      %170 = vector.shape_cast %169 : vector<1x8x128xf32> to vector<8x128xf32>
      %c0_89 = arith.constant 0 : index
      %c0_90 = arith.constant 0 : index
      %c0_91 = arith.constant 0 : index
      %171 = vector.load %arg16[%c0_89, %c0_90, %c0_91] : memref<1x8x128xf32, #tpu.memory_space<vmem>>, vector<1x8x128xf32>
      %172 = vector.shape_cast %171 : vector<1x8x128xf32> to vector<8x128xf32>
      %173 = vector.shape_cast %170 : vector<8x128xf32> to vector<1x8x128xf32>
      tpu.vector_store %arg16[%c0_89, %c0_90, %c0_91], %173 {strides = array<i32>} : memref<1x8x128xf32, #tpu.memory_space<vmem>>, vector<1x8x128xf32>,
    } else {
    }
    %c0 = arith.constant 0 : index
    %c0_1 = arith.constant 0 : index
    %c0_2 = arith.constant 0 : index
    %3 = vector.load %arg16[%c0, %c0_1, %c0_2] : memref<1x8x128xf32, #tpu.memory_space<vmem>>, vector<1x8x128xf32>
    %4 = vector.shape_cast %3 : vector<1x8x128xf32> to vector<8x128xf32>
    %c0_3 = arith.constant 0 : index
    %c0_4 = arith.constant 0 : index
    %c0_5 = arith.constant 0 : index
    %5 = vector.load %arg3[%c0_3, %c0_4, %c0_5] : memref<1x128x128xf32, #tpu.memory_space<vmem>>, vector<1x128x128xf32>
    %6 = vector.shape_cast %5 : vector<1x128x128xf32> to vector<128x128xf32>
    %cst = arith.constant dense<0.000000e+00> : vector<8x128xf32>
    %7 = tpu.matmul %4, %6, %cst {dimension_numbers = #tpu.dot_dimension_numbers<[1], [0], [0], [1], [0, 0, 1, 1], [], []>} : vector<8x128xf32>, vector<128x128xf32>, vector<8x128xf32> -> vector<8x128xf32>
    %c0_6 = arith.constant 0 : index
    %c0_7 = arith.constant 0 : index
    %c0_8 = arith.constant 0 : index
    %8 = vector.load %arg4[%c0_6, %c0_7, %c0_8] : memref<1x128x128xf32, #tpu.memory_space<vmem>>, vector<1x128x128xf32>
    %9 = vector.shape_cast %8 : vector<1x128x128xf32> to vector<128x128xf32>
    %cst_9 = arith.constant dense<0.000000e+00> : vector<8x128xf32>
    %10 = tpu.matmul %4, %9, %cst_9 {dimension_numbers = #tpu.dot_dimension_numbers<[1], [0], [0], [1], [0, 0, 1, 1], [], []>} : vector<8x128xf32>, vector<128x128xf32>, vector<8x128xf32> -> vector<8x128xf32>
    %c0_10 = arith.constant 0 : index
    %c0_11 = arith.constant 0 : index
    %c0_12 = arith.constant 0 : index
    %11 = vector.load %arg5[%c0_10, %c0_11, %c0_12] : memref<1x128x128xf32, #tpu.memory_space<vmem>>, vector<1x128x128xf32>
    %12 = vector.shape_cast %11 : vector<1x128x128xf32> to vector<128x128xf32>
    %cst_13 = arith.constant dense<0.000000e+00> : vector<8x128xf32>
    %13 = tpu.matmul %4, %12, %cst_13 {dimension_numbers = #tpu.dot_dimension_numbers<[1], [0], [0], [1], [0, 0, 1, 1], [], []>} : vector<8x128xf32>, vector<128x128xf32>, vector<8x128xf32> -> vector<8x128xf32>
    %14 = tpu.iota {dimensions = array<i32: 0>} : vector<8x8xi32>
    %15 = tpu.iota {dimensions = array<i32: 1>} : vector<8x8xi32>
    %16 = arith.cmpi sgt, %15, %14 : vector<8x8xi32>
    %cst_14 = arith.constant -1.000000e+30 : f32
    %cst_15 = arith.constant 0.000000e+00 : f32
    %17 = vector.broadcast %cst_14 : f32 to vector<8x8xf32>
    %18 = vector.broadcast %cst_15 : f32 to vector<8x8xf32>
    %19 = arith.select %16, %17, %18 : vector<8x8xi1>, vector<8x8xf32>
    %20 = vector.extract_strided_slice %7 {offsets = [0, 0], sizes = [8, 32], strides = [1, 1]} : vector<8x128xf32> to vector<8x32xf32>
    %21 = vector.extract_strided_slice %10 {offsets = [0, 0], sizes = [8, 32], strides = [1, 1]} : vector<8x128xf32> to vector<8x32xf32>
    %22 = vector.extract_strided_slice %13 {offsets = [0, 0], sizes = [8, 32], strides = [1, 1]} : vector<8x128xf32> to vector<8x32xf32>
    %cst_16 = arith.constant dense<0.000000e+00> : vector<8x8xf32>
    %23 = tpu.matmul %20, %21, %cst_16 {dimension_numbers = #tpu.dot_dimension_numbers<[1], [1], [0], [0], [0, 0, 1, 0], [], []>} : vector<8x32xf32>, vector<8x32xf32>, vector<8x8xf32> -> vector<8x8xf32>
    %24 = arith.addf %23, %19 : vector<8x8xf32>
    %cst_17 = arith.constant dense<0xFF800000> : vector<8xf32>
    %25 = vector.multi_reduction <maximumf>, %24, %cst_17 [1] : vector<8x8xf32> to vector<8xf32>
    %26 = vector.shape_cast %25 : vector<8xf32> to vector<8x1xf32>
    %27 = vector.broadcast %26 : vector<8x1xf32> to vector<8x8xf32>
    %28 = arith.subf %24, %27 : vector<8x8xf32>
    %29 = math.exp %28 : vector<8x8xf32>
    %cst_18 = arith.constant dense<0.000000e+00> : vector<8xf32>
    %30 = vector.multi_reduction <add>, %29, %cst_18 [1] : vector<8x8xf32> to vector<8xf32>
    %31 = vector.shape_cast %30 : vector<8xf32> to vector<8x1xf32>
    %32 = tpu.reciprocal %31 {approx = true} : vector<8x1xf32> -> vector<8x1xf32>
    %33 = vector.broadcast %32 : vector<8x1xf32> to vector<8x8xf32>
    %34 = arith.mulf %29, %33 : vector<8x8xf32>
    %cst_19 = arith.constant dense<0.000000e+00> : vector<8x32xf32>
    %35 = tpu.matmul %34, %22, %cst_19 {dimension_numbers = #tpu.dot_dimension_numbers<[1], [0], [0], [1], [0, 0, 1, 1], [], []>} : vector<8x8xf32>, vector<8x32xf32>, vector<8x32xf32> -> vector<8x32xf32>
    %c0_20 = arith.constant 0 : index
    %c0_21 = arith.constant 0 : index
    %36 = vector.load %arg17[%c0_20, %c0_21] : memref<8x128xf32, #tpu.memory_space<vmem>>, vector<8x32xf32>
    tpu.vector_store %arg17[%c0_20, %c0_21], %35 {strides = array<i32>} : memref<8x128xf32, #tpu.memory_space<vmem>>, vector<8x32xf32>,
    %37 = vector.extract_strided_slice %7 {offsets = [0, 32], sizes = [8, 32], strides = [1, 1]} : vector<8x128xf32> to vector<8x32xf32>
    %38 = vector.extract_strided_slice %10 {offsets = [0, 32], sizes = [8, 32], strides = [1, 1]} : vector<8x128xf32> to vector<8x32xf32>
    %39 = vector.extract_strided_slice %13 {offsets = [0, 32], sizes = [8, 32], strides = [1, 1]} : vector<8x128xf32> to vector<8x32xf32>
    %cst_22 = arith.constant dense<0.000000e+00> : vector<8x8xf32>
    %40 = tpu.matmul %37, %38, %cst_22 {dimension_numbers = #tpu.dot_dimension_numbers<[1], [1], [0], [0], [0, 0, 1, 0], [], []>} : vector<8x32xf32>, vector<8x32xf32>, vector<8x8xf32> -> vector<8x8xf32>
    %41 = arith.addf %40, %19 : vector<8x8xf32>
    %cst_23 = arith.constant dense<0xFF800000> : vector<8xf32>
    %42 = vector.multi_reduction <maximumf>, %41, %cst_23 [1] : vector<8x8xf32> to vector<8xf32>
    %43 = vector.shape_cast %42 : vector<8xf32> to vector<8x1xf32>
    %44 = vector.broadcast %43 : vector<8x1xf32> to vector<8x8xf32>
    %45 = arith.subf %41, %44 : vector<8x8xf32>
    %46 = math.exp %45 : vector<8x8xf32>
    %cst_24 = arith.constant dense<0.000000e+00> : vector<8xf32>
    %47 = vector.multi_reduction <add>, %46, %cst_24 [1] : vector<8x8xf32> to vector<8xf32>
    %48 = vector.shape_cast %47 : vector<8xf32> to vector<8x1xf32>
    %49 = tpu.reciprocal %48 {approx = true} : vector<8x1xf32> -> vector<8x1xf32>
    %50 = vector.broadcast %49 : vector<8x1xf32> to vector<8x8xf32>
    %51 = arith.mulf %46, %50 : vector<8x8xf32>
    %cst_25 = arith.constant dense<0.000000e+00> : vector<8x32xf32>
    %52 = tpu.matmul %51, %39, %cst_25 {dimension_numbers = #tpu.dot_dimension_numbers<[1], [0], [0], [1], [0, 0, 1, 1], [], []>} : vector<8x8xf32>, vector<8x32xf32>, vector<8x32xf32> -> vector<8x32xf32>
    %c0_26 = arith.constant 0 : index
    %c32 = arith.constant 32 : index
    %53 = vector.load %arg17[%c0_26, %c32] : memref<8x128xf32, #tpu.memory_space<vmem>>, vector<8x32xf32>
    tpu.vector_store %arg17[%c0_26, %c32], %52 {strides = array<i32>} : memref<8x128xf32, #tpu.memory_space<vmem>>, vector<8x32xf32>,
    %54 = vector.extract_strided_slice %7 {offsets = [0, 64], sizes = [8, 32], strides = [1, 1]} : vector<8x128xf32> to vector<8x32xf32>
    %55 = vector.extract_strided_slice %10 {offsets = [0, 64], sizes = [8, 32], strides = [1, 1]} : vector<8x128xf32> to vector<8x32xf32>
    %56 = vector.extract_strided_slice %13 {offsets = [0, 64], sizes = [8, 32], strides = [1, 1]} : vector<8x128xf32> to vector<8x32xf32>
    %cst_27 = arith.constant dense<0.000000e+00> : vector<8x8xf32>
    %57 = tpu.matmul %54, %55, %cst_27 {dimension_numbers = #tpu.dot_dimension_numbers<[1], [1], [0], [0], [0, 0, 1, 0], [], []>} : vector<8x32xf32>, vector<8x32xf32>, vector<8x8xf32> -> vector<8x8xf32>
    %58 = arith.addf %57, %19 : vector<8x8xf32>
    %cst_28 = arith.constant dense<0xFF800000> : vector<8xf32>
    %59 = vector.multi_reduction <maximumf>, %58, %cst_28 [1] : vector<8x8xf32> to vector<8xf32>
    %60 = vector.shape_cast %59 : vector<8xf32> to vector<8x1xf32>
    %61 = vector.broadcast %60 : vector<8x1xf32> to vector<8x8xf32>
    %62 = arith.subf %58, %61 : vector<8x8xf32>
    %63 = math.exp %62 : vector<8x8xf32>
    %cst_29 = arith.constant dense<0.000000e+00> : vector<8xf32>
    %64 = vector.multi_reduction <add>, %63, %cst_29 [1] : vector<8x8xf32> to vector<8xf32>
    %65 = vector.shape_cast %64 : vector<8xf32> to vector<8x1xf32>
    %66 = tpu.reciprocal %65 {approx = true} : vector<8x1xf32> -> vector<8x1xf32>
    %67 = vector.broadcast %66 : vector<8x1xf32> to vector<8x8xf32>
    %68 = arith.mulf %63, %67 : vector<8x8xf32>
    %cst_30 = arith.constant dense<0.000000e+00> : vector<8x32xf32>
    %69 = tpu.matmul %68, %56, %cst_30 {dimension_numbers = #tpu.dot_dimension_numbers<[1], [0], [0], [1], [0, 0, 1, 1], [], []>} : vector<8x8xf32>, vector<8x32xf32>, vector<8x32xf32> -> vector<8x32xf32>
    %c0_31 = arith.constant 0 : index
    %c64 = arith.constant 64 : index
    %70 = vector.load %arg17[%c0_31, %c64] : memref<8x128xf32, #tpu.memory_space<vmem>>, vector<8x32xf32>
    tpu.vector_store %arg17[%c0_31, %c64], %69 {strides = array<i32>} : memref<8x128xf32, #tpu.memory_space<vmem>>, vector<8x32xf32>,
    %71 = vector.extract_strided_slice %7 {offsets = [0, 96], sizes = [8, 32], strides = [1, 1]} : vector<8x128xf32> to vector<8x32xf32>
    %72 = vector.extract_strided_slice %10 {offsets = [0, 96], sizes = [8, 32], strides = [1, 1]} : vector<8x128xf32> to vector<8x32xf32>
    %73 = vector.extract_strided_slice %13 {offsets = [0, 96], sizes = [8, 32], strides = [1, 1]} : vector<8x128xf32> to vector<8x32xf32>
    %cst_32 = arith.constant dense<0.000000e+00> : vector<8x8xf32>
    %74 = tpu.matmul %71, %72, %cst_32 {dimension_numbers = #tpu.dot_dimension_numbers<[1], [1], [0], [0], [0, 0, 1, 0], [], []>} : vector<8x32xf32>, vector<8x32xf32>, vector<8x8xf32> -> vector<8x8xf32>
    %75 = arith.addf %74, %19 : vector<8x8xf32>
    %cst_33 = arith.constant dense<0xFF800000> : vector<8xf32>
    %76 = vector.multi_reduction <maximumf>, %75, %cst_33 [1] : vector<8x8xf32> to vector<8xf32>
    %77 = vector.shape_cast %76 : vector<8xf32> to vector<8x1xf32>
    %78 = vector.broadcast %77 : vector<8x1xf32> to vector<8x8xf32>
    %79 = arith.subf %75, %78 : vector<8x8xf32>
    %80 = math.exp %79 : vector<8x8xf32>
    %cst_34 = arith.constant dense<0.000000e+00> : vector<8xf32>
    %81 = vector.multi_reduction <add>, %80, %cst_34 [1] : vector<8x8xf32> to vector<8xf32>
    %82 = vector.shape_cast %81 : vector<8xf32> to vector<8x1xf32>
    %83 = tpu.reciprocal %82 {approx = true} : vector<8x1xf32> -> vector<8x1xf32>
    %84 = vector.broadcast %83 : vector<8x1xf32> to vector<8x8xf32>
    %85 = arith.mulf %80, %84 : vector<8x8xf32>
    %cst_35 = arith.constant dense<0.000000e+00> : vector<8x32xf32>
    %86 = tpu.matmul %85, %73, %cst_35 {dimension_numbers = #tpu.dot_dimension_numbers<[1], [0], [0], [1], [0, 0, 1, 1], [], []>} : vector<8x8xf32>, vector<8x32xf32>, vector<8x32xf32> -> vector<8x32xf32>
    %c0_36 = arith.constant 0 : index
    %c96 = arith.constant 96 : index
    %87 = vector.load %arg17[%c0_36, %c96] : memref<8x128xf32, #tpu.memory_space<vmem>>, vector<8x32xf32>
    tpu.vector_store %arg17[%c0_36, %c96], %86 {strides = array<i32>} : memref<8x128xf32, #tpu.memory_space<vmem>>, vector<8x32xf32>,
    %c0_37 = arith.constant 0 : index
    %c0_38 = arith.constant 0 : index
    %88 = vector.load %arg17[%c0_37, %c0_38] : memref<8x128xf32, #tpu.memory_space<vmem>>, vector<8x128xf32>
    %c0_39 = arith.constant 0 : index
    %c0_40 = arith.constant 0 : index
    %c0_41 = arith.constant 0 : index
    %89 = vector.load %arg6[%c0_39, %c0_40, %c0_41] : memref<1x128x128xf32, #tpu.memory_space<vmem>>, vector<1x128x128xf32>
    %90 = vector.shape_cast %89 : vector<1x128x128xf32> to vector<128x128xf32>
    %cst_42 = arith.constant dense<0.000000e+00> : vector<8x128xf32>
    %91 = tpu.matmul %88, %90, %cst_42 {dimension_numbers = #tpu.dot_dimension_numbers<[1], [0], [0], [1], [0, 0, 1, 1], [], []>} : vector<8x128xf32>, vector<128x128xf32>, vector<8x128xf32> -> vector<8x128xf32>
    %c0_43 = arith.constant 0 : index
    %c0_44 = arith.constant 0 : index
    %c0_45 = arith.constant 0 : index
    %92 = vector.load %arg7[%c0_43, %c0_44, %c0_45] : memref<1x1x128xf32, #tpu.memory_space<vmem>>, vector<1x1x128xf32>
    %93 = vector.shape_cast %92 : vector<1x1x128xf32> to vector<1x128xf32>
    %94 = vector.broadcast %93 : vector<1x128xf32> to vector<8x128xf32>
    %95 = arith.addf %91, %94 : vector<8x128xf32>
    %96 = arith.addf %95, %4 : vector<8x128xf32>
    %c0_46 = arith.constant 0 : index
    %c0_47 = arith.constant 0 : index
    %c0_48 = arith.constant 0 : index
    %97 = vector.load %arg8[%c0_46, %c0_47, %c0_48] : memref<1x1x128xf32, #tpu.memory_space<vmem>>, vector<1x1x128xf32>
    %98 = vector.shape_cast %97 : vector<1x1x128xf32> to vector<1x128xf32>
    %c0_49 = arith.constant 0 : index
    %c0_50 = arith.constant 0 : index
    %c0_51 = arith.constant 0 : index
    %99 = vector.load %arg9[%c0_49, %c0_50, %c0_51] : memref<1x1x128xf32, #tpu.memory_space<vmem>>, vector<1x1x128xf32>
    %100 = vector.shape_cast %99 : vector<1x1x128xf32> to vector<1x128xf32>
    %cst_52 = arith.constant dense<0.000000e+00> : vector<8xf32>
    %101 = vector.multi_reduction <add>, %96, %cst_52 [1] : vector<8x128xf32> to vector<8xf32>
    %102 = vector.shape_cast %101 : vector<8xf32> to vector<8x1xf32>
    %cst_53 = arith.constant 1.280000e+02 : f32
    %103 = vector.broadcast %cst_53 : f32 to vector<8x1xf32>
    %104 = arith.divf %102, %103 : vector<8x1xf32>
    %105 = vector.broadcast %104 : vector<8x1xf32> to vector<8x128xf32>
    %106 = arith.subf %96, %105 : vector<8x128xf32>
    %107 = arith.mulf %106, %106 : vector<8x128xf32>
    %cst_54 = arith.constant dense<0.000000e+00> : vector<8xf32>
    %108 = vector.multi_reduction <add>, %107, %cst_54 [1] : vector<8x128xf32> to vector<8xf32>
    %109 = vector.shape_cast %108 : vector<8xf32> to vector<8x1xf32>
    %cst_55 = arith.constant 1.280000e+02 : f32
    %110 = vector.broadcast %cst_55 : f32 to vector<8x1xf32>
    %111 = arith.divf %109, %110 : vector<8x1xf32>
    %112 = vector.broadcast %104 : vector<8x1xf32> to vector<8x128xf32>
    %113 = arith.subf %96, %112 : vector<8x128xf32>
    %cst_56 = arith.constant 9.99999974E-6 : f32
    %114 = vector.broadcast %cst_56 : f32 to vector<8x1xf32>
    %115 = arith.addf %111, %114 : vector<8x1xf32>
    %116 = math.sqrt %115 : vector<8x1xf32>
    %117 = vector.broadcast %116 : vector<8x1xf32> to vector<8x128xf32>
    %118 = arith.divf %113, %117 : vector<8x128xf32>
    %119 = vector.broadcast %98 : vector<1x128xf32> to vector<8x128xf32>
    %120 = arith.mulf %118, %119 : vector<8x128xf32>
    %121 = vector.broadcast %100 : vector<1x128xf32> to vector<8x128xf32>
    %122 = arith.addf %120, %121 : vector<8x128xf32>
    %c0_57 = arith.constant 0 : index
    %c0_58 = arith.constant 0 : index
    %c0_59 = arith.constant 0 : index
    %123 = vector.load %arg10[%c0_57, %c0_58, %c0_59] : memref<1x128x128xf32, #tpu.memory_space<vmem>>, vector<1x128x128xf32>
    %124 = vector.shape_cast %123 : vector<1x128x128xf32> to vector<128x128xf32>
    %cst_60 = arith.constant dense<0.000000e+00> : vector<8x128xf32>
    %125 = tpu.matmul %122, %124, %cst_60 {dimension_numbers = #tpu.dot_dimension_numbers<[1], [0], [0], [1], [0, 0, 1, 1], [], []>} : vector<8x128xf32>, vector<128x128xf32>, vector<8x128xf32> -> vector<8x128xf32>
    %c0_61 = arith.constant 0 : index
    %c0_62 = arith.constant 0 : index
    %c0_63 = arith.constant 0 : index
    %126 = vector.load %arg11[%c0_61, %c0_62, %c0_63] : memref<1x1x128xf32, #tpu.memory_space<vmem>>, vector<1x1x128xf32>
    %127 = vector.shape_cast %126 : vector<1x1x128xf32> to vector<1x128xf32>
    %128 = vector.broadcast %127 : vector<1x128xf32> to vector<8x128xf32>
    %129 = arith.addf %125, %128 : vector<8x128xf32>
    %cst_64 = arith.constant 0.000000e+00 : f32
    %130 = vector.broadcast %cst_64 : f32 to vector<8x128xf32>
    %131 = arith.maximumf %129, %130 : vector<8x128xf32>
    %c0_65 = arith.constant 0 : index
    %c0_66 = arith.constant 0 : index
    %c0_67 = arith.constant 0 : index
    %132 = vector.load %arg12[%c0_65, %c0_66, %c0_67] : memref<1x128x128xf32, #tpu.memory_space<vmem>>, vector<1x128x128xf32>
    %133 = vector.shape_cast %132 : vector<1x128x128xf32> to vector<128x128xf32>
    %cst_68 = arith.constant dense<0.000000e+00> : vector<8x128xf32>
    %134 = tpu.matmul %131, %133, %cst_68 {dimension_numbers = #tpu.dot_dimension_numbers<[1], [0], [0], [1], [0, 0, 1, 1], [], []>} : vector<8x128xf32>, vector<128x128xf32>, vector<8x128xf32> -> vector<8x128xf32>
    %c0_69 = arith.constant 0 : index
    %c0_70 = arith.constant 0 : index
    %c0_71 = arith.constant 0 : index
    %135 = vector.load %arg13[%c0_69, %c0_70, %c0_71] : memref<1x1x128xf32, #tpu.memory_space<vmem>>, vector<1x1x128xf32>
    %136 = vector.shape_cast %135 : vector<1x1x128xf32> to vector<1x128xf32>
    %137 = vector.broadcast %136 : vector<1x128xf32> to vector<8x128xf32>
    %138 = arith.addf %134, %137 : vector<8x128xf32>
    %139 = arith.addf %138, %122 : vector<8x128xf32>
    %c0_72 = arith.constant 0 : index
    %c0_73 = arith.constant 0 : index
    %c0_74 = arith.constant 0 : index
    %140 = vector.load %arg14[%c0_72, %c0_73, %c0_74] : memref<1x1x128xf32, #tpu.memory_space<vmem>>, vector<1x1x128xf32>
    %141 = vector.shape_cast %140 : vector<1x1x128xf32> to vector<1x128xf32>
    %c0_75 = arith.constant 0 : index
    %c0_76 = arith.constant 0 : index
    %c0_77 = arith.constant 0 : index
    %142 = vector.load %arg15[%c0_75, %c0_76, %c0_77] : memref<1x1x128xf32, #tpu.memory_space<vmem>>, vector<1x1x128xf32>
    %143 = vector.shape_cast %142 : vector<1x1x128xf32> to vector<1x128xf32>
    %cst_78 = arith.constant dense<0.000000e+00> : vector<8xf32>
    %144 = vector.multi_reduction <add>, %139, %cst_78 [1] : vector<8x128xf32> to vector<8xf32>
    %145 = vector.shape_cast %144 : vector<8xf32> to vector<8x1xf32>
    %cst_79 = arith.constant 1.280000e+02 : f32
    %146 = vector.broadcast %cst_79 : f32 to vector<8x1xf32>
    %147 = arith.divf %145, %146 : vector<8x1xf32>
    %148 = vector.broadcast %147 : vector<8x1xf32> to vector<8x128xf32>
    %149 = arith.subf %139, %148 : vector<8x128xf32>
    %150 = arith.mulf %149, %149 : vector<8x128xf32>
    %cst_80 = arith.constant dense<0.000000e+00> : vector<8xf32>
    %151 = vector.multi_reduction <add>, %150, %cst_80 [1] : vector<8x128xf32> to vector<8xf32>
    %152 = vector.shape_cast %151 : vector<8xf32> to vector<8x1xf32>
    %cst_81 = arith.constant 1.280000e+02 : f32
    %153 = vector.broadcast %cst_81 : f32 to vector<8x1xf32>
    %154 = arith.divf %152, %153 : vector<8x1xf32>
    %155 = vector.broadcast %147 : vector<8x1xf32> to vector<8x128xf32>
    %156 = arith.subf %139, %155 : vector<8x128xf32>
    %cst_82 = arith.constant 9.99999974E-6 : f32
    %157 = vector.broadcast %cst_82 : f32 to vector<8x1xf32>
    %158 = arith.addf %154, %157 : vector<8x1xf32>
    %159 = math.sqrt %158 : vector<8x1xf32>
    %160 = vector.broadcast %159 : vector<8x1xf32> to vector<8x128xf32>
    %161 = arith.divf %156, %160 : vector<8x128xf32>
    %162 = vector.broadcast %141 : vector<1x128xf32> to vector<8x128xf32>
    %163 = arith.mulf %161, %162 : vector<8x128xf32>
    %164 = vector.broadcast %143 : vector<1x128xf32> to vector<8x128xf32>
    %165 = arith.addf %163, %164 : vector<8x128xf32>
    %c0_83 = arith.constant 0 : index
    %c0_84 = arith.constant 0 : index
    %c0_85 = arith.constant 0 : index
    %166 = vector.load %arg16[%c0_83, %c0_84, %c0_85] : memref<1x8x128xf32, #tpu.memory_space<vmem>>, vector<1x8x128xf32>
    %167 = vector.shape_cast %166 : vector<1x8x128xf32> to vector<8x128xf32>
    %168 = vector.shape_cast %165 : vector<8x128xf32> to vector<1x8x128xf32>
    tpu.vector_store %arg16[%c0_83, %c0_84, %c0_85], %168 {strides = array<i32>} : memref<1x8x128xf32, #tpu.memory_space<vmem>>, vector<1x8x128xf32>,
    return
  }
  func.func @transform_0(%arg0: i32, %arg1: i32) -> (i32, i32, i32) {
    %c0_i32 = arith.constant 0 : i32
    %c0_i32_0 = arith.constant 0 : i32
    %c0_i32_1 = arith.constant 0 : i32
    return %arg0, %c0_i32, %c0_i32_0 : i32, i32, i32
  }
  func.func @transform_1(%arg0: i32, %arg1: i32) -> (i32, i32, i32) {
    %c0_i32 = arith.constant 0 : i32
    %c0_i32_0 = arith.constant 0 : i32
    %c0_i32_1 = arith.constant 0 : i32
    return %arg1, %c0_i32, %c0_i32_0 : i32, i32, i32
  }
  func.func @transform_2(%arg0: i32, %arg1: i32) -> (i32, i32, i32) {
    %c0_i32 = arith.constant 0 : i32
    %c0_i32_0 = arith.constant 0 : i32
    %c0_i32_1 = arith.constant 0 : i32
    return %arg1, %c0_i32, %c0_i32_0 : i32, i32, i32
  }
  func.func @transform_3(%arg0: i32, %arg1: i32) -> (i32, i32, i32) {
    %c0_i32 = arith.constant 0 : i32
    %c0_i32_0 = arith.constant 0 : i32
    %c0_i32_1 = arith.constant 0 : i32
    return %arg1, %c0_i32, %c0_i32_0 : i32, i32, i32
  }
  func.func @transform_4(%arg0: i32, %arg1: i32) -> (i32, i32, i32) {
    %c0_i32 = arith.constant 0 : i32
    %c0_i32_0 = arith.constant 0 : i32
    %c0_i32_1 = arith.constant 0 : i32
    return %arg1, %c0_i32, %c0_i32_0 : i32, i32, i32
  }
  func.func @transform_5(%arg0: i32, %arg1: i32) -> (i32, i32, i32) {
    %c0_i32 = arith.constant 0 : i32
    %c0_i32_0 = arith.constant 0 : i32
    %c0_i32_1 = arith.constant 0 : i32
    return %arg1, %c0_i32, %c0_i32_0 : i32, i32, i32
  }
  func.func @transform_6(%arg0: i32, %arg1: i32) -> (i32, i32, i32) {
    %c0_i32 = arith.constant 0 : i32
    %c0_i32_0 = arith.constant 0 : i32
    %c0_i32_1 = arith.constant 0 : i32
    return %arg1, %c0_i32, %c0_i32_0 : i32, i32, i32
  }
  func.func @transform_7(%arg0: i32, %arg1: i32) -> (i32, i32, i32) {
    %c0_i32 = arith.constant 0 : i32
    %c0_i32_0 = arith.constant 0 : i32
    %c0_i32_1 = arith.constant 0 : i32
    return %arg1, %c0_i32, %c0_i32_0 : i32, i32, i32
  }
  func.func @transform_8(%arg0: i32, %arg1: i32) -> (i32, i32, i32) {
    %c0_i32 = arith.constant 0 : i32
    %c0_i32_0 = arith.constant 0 : i32
    %c0_i32_1 = arith.constant 0 : i32
    return %arg1, %c0_i32, %c0_i32_0 : i32, i32, i32
  }
  func.func @transform_9(%arg0: i32, %arg1: i32) -> (i32, i32, i32) {
    %c0_i32 = arith.constant 0 : i32
    %c0_i32_0 = arith.constant 0 : i32
    %c0_i32_1 = arith.constant 0 : i32
    return %arg1, %c0_i32, %c0_i32_0 : i32, i32, i32
  }
  func.func @transform_10(%arg0: i32, %arg1: i32) -> (i32, i32, i32) {
    %c0_i32 = arith.constant 0 : i32
    %c0_i32_0 = arith.constant 0 : i32
    %c0_i32_1 = arith.constant 0 : i32
    return %arg1, %c0_i32, %c0_i32_0 : i32, i32, i32
  }
  func.func @transform_11(%arg0: i32, %arg1: i32) -> (i32, i32, i32) {
    %c0_i32 = arith.constant 0 : i32
    %c0_i32_0 = arith.constant 0 : i32
    %c0_i32_1 = arith.constant 0 : i32
    return %arg1, %c0_i32, %c0_i32_0 : i32, i32, i32
  }
  func.func @transform_12(%arg0: i32, %arg1: i32) -> (i32, i32, i32) {
    %c0_i32 = arith.constant 0 : i32
    %c0_i32_0 = arith.constant 0 : i32
    %c0_i32_1 = arith.constant 0 : i32
    return %arg1, %c0_i32, %c0_i32_0 : i32, i32, i32
  }
  func.func @transform_13(%arg0: i32, %arg1: i32) -> (i32, i32, i32) {
    %c0_i32 = arith.constant 0 : i32
    %c0_i32_0 = arith.constant 0 : i32
    %c0_i32_1 = arith.constant 0 : i32
    return %arg1, %c0_i32, %c0_i32_0 : i32, i32, i32
  }
  func.func @transform_14(%arg0: i32, %arg1: i32) -> (i32, i32, i32) {
    %c0_i32 = arith.constant 0 : i32
    %c0_i32_0 = arith.constant 0 : i32
    %c0_i32_1 = arith.constant 0 : i32
    return %arg0, %c0_i32, %c0_i32_0 : i32, i32, i32
  }
}

</mosaic_0001>

<llo_original>
// kernel: tpu_custom_call.1
$region0: #{tpu_custom_call.1}
  #allocation0 [shape = 'u32[]', space=smem, size = 0x4, offset = 0x4, fixed_abs, tag = 'smem constant byte address 0x4 - core index']
  #allocation1 [shape = 'u32[144,128]{1,0:T(1,128)}', space=vmem, size = 0x12000, scoped, tag = 'internal scratch']
  #allocation2 [shape = 'f32[8,128]{1,0:T(8,128)}', space=vmem, size = 0x1000, scoped, tag = 'scratch operand']
  %s0 = inlined_call_operand.hbm [shape: f32[2,8,128], index: 0, kind: input, shape index: {}]
  %s1 = inlined_call_operand.hbm [shape: f32[2,128,128], index: 1, kind: input, shape index: {}]
  %s2 = inlined_call_operand.hbm [shape: f32[2,128,128], index: 2, kind: input, shape index: {}]
  %s3 = inlined_call_operand.hbm [shape: f32[2,128,128], index: 3, kind: input, shape index: {}]
  %s4 = inlined_call_operand.hbm [shape: f32[2,128,128], index: 4, kind: input, shape index: {}]
  %s5 = inlined_call_operand.vmem [shape: f32[2,1,128], index: 5, kind: input, shape index: {}]
  %s6 = inlined_call_operand.vmem [shape: f32[2,1,128], index: 6, kind: input, shape index: {}]
  %s7 = inlined_call_operand.vmem [shape: f32[2,1,128], index: 7, kind: input, shape index: {}]
  %s8 = inlined_call_operand.hbm [shape: f32[2,128,128], index: 8, kind: input, shape index: {}]
  %s9 = inlined_call_operand.vmem [shape: f32[2,1,128], index: 9, kind: input, shape index: {}]
  %s10 = inlined_call_operand.hbm [shape: f32[2,128,128], index: 10, kind: input, shape index: {}]
  %s11 = inlined_call_operand.vmem [shape: f32[2,1,128], index: 11, kind: input, shape index: {}]
  %s12 = inlined_call_operand.vmem [shape: f32[2,1,128], index: 12, kind: input, shape index: {}]
  %s13 = inlined_call_operand.vmem [shape: f32[2,1,128], index: 13, kind: input, shape index: {}]
  %s14 = inlined_call_operand.hbm [shape: f32[2,8,128], index: 14, kind: output, shape index: {}]
  %s15 = sld [smem:[#allocation0]]
  $region121: #{tpu_custom_call.1} parent=0
    _
  %s17 = ssub.s32 1, %s15
  %s18 = scalar_select 0, %s17, %s15
  $region1: #{tpu_custom_call.1} parent=0
    #allocation3 [shape = 'u8[8192]{0}', space=vmem, size = 0x2000, scoped, tag = 'input window, operand 0']
    #allocation4 [shape = 's32[2]{0}', space=sflag, size = 0x8, scoped, tag = 'scoped memory for tpu_custom_call.1']
    #allocation5 [shape = 's32[2]{0}', space=sflag, size = 0x8, scoped, tag = 'scoped memory for tpu_custom_call.1']
    #allocation6 [shape = 'u8[131072]{0}', space=vmem, size = 0x20000, scoped, tag = 'input window, operand 1']
    #allocation7 [shape = 's32[2]{0}', space=sflag, size = 0x8, scoped, tag = 'scoped memory for tpu_custom_call.1']
    #allocation8 [shape = 'u8[131072]{0}', space=vmem, size = 0x20000, scoped, tag = 'input window, operand 2']
    #allocation9 [shape = 'u8[131072]{0}', space=vmem, size = 0x20000, scoped, tag = 'input window, operand 3']
    #allocation10 [shape = 's32[2]{0}', space=sflag, size = 0x8, scoped, tag = 'scoped memory for tpu_custom_call.1']
    #allocation11 [shape = 'u8[131072]{0}', space=vmem, size = 0x20000, scoped, tag = 'input window, operand 4']
    #allocation12 [shape = 'u8[131072]{0}', space=vmem, size = 0x20000, scoped, tag = 'input window, operand 8']
    #allocation13 [shape = 's32[2]{0}', space=sflag, size = 0x8, scoped, tag = 'scoped memory for tpu_custom_call.1']
    #allocation14 [shape = 'u8[131072]{0}', space=vmem, size = 0x20000, scoped, tag = 'input window, operand 10']
    #allocation15 [shape = 'u8[8192]{0}', space=vmem, size = 0x2000, scoped, tag = 'output window, operand 0']
    %19 = vsyncpa [#allocation4], 0
    %s20 = scalar_lea.sflag [#allocation4], 1
    %21 = vsyncpa %s20, 0
    %22 = vsyncpa [#allocation7], 0
    %s23 = scalar_lea.sflag [#allocation7], 1
    %24 = vsyncpa %s23, 0
    %25 = vsyncpa [#allocation10], 0
    %s26 = scalar_lea.sflag [#allocation10], 1
    %27 = vsyncpa %s26, 0
    %28 = vsyncpa [#allocation13], 0
    %s29 = scalar_lea.sflag [#allocation13], 1
    %30 = vsyncpa %s29, 0
    %31 = vsyncpa [#allocation5], 0
    %s32 = scalar_lea.sflag [#allocation5], 1
    %33 = vsyncpa %s32, 0
    loop: start=0, step=1, limit=6
    $region2: #{tpu_custom_call.1} parent=1 // loop_pre_header
      _
    $region3: #{tpu_custom_call.1} parent=1 // loop_header
      %s35 = sphi 0, %s39
      %p36 = scmp.ge.s32.totalorder %s35, 6
      %s42 = sphi 0, %s54
      %s43 = sphi 0, %s50
      %s44 = sphi 0, %s42
      %s45 = sphi 0, %s43
      %s46 = sphi 0, %s44
      %s47 = sphi 0, %s45
      %s57 = sphi 0, %s59
      %s60 = sphi 0, %s57
      %s61 = sphi 0, %s60
      %s77 = sphi 0, %s61
      %s83 = sphi 0, %s85
      %s86 = sphi 0, %s83
      %s87 = sphi 0, %s86
      %s103 = sphi 0, %s87
      %s109 = sphi 0, %s111
      %s112 = sphi 0, %s109
      %s113 = sphi 0, %s112
      %s129 = sphi 0, %s113
      %s135 = sphi 0, %s137
      %s138 = sphi 0, %s135
      %s139 = sphi 0, %s138
      %s155 = sphi 0, %s139
      %s161 = sphi 0, %s163
      %s164 = sphi 0, %s161
      %s165 = sphi 0, %s164
      %s181 = sphi 0, %s165
      %s187 = sphi 0, %s189
      %s190 = sphi 0, %s187
      %s191 = sphi 0, %s190
      %s207 = sphi 0, %s191
      %s213 = sphi 0, %s215
      %s216 = sphi 0, %s213
      %s217 = sphi 0, %s216
      %s233 = sphi 0, %s217
      %s239 = sphi 0, %s241
      %s242 = sphi 0, %s239
      %s243 = sphi 0, %s242
      %s259 = sphi 0, %s243
      %s265 = sphi 0, %s267
      %s268 = sphi 0, %s265
      %s269 = sphi 0, %s268
      %s285 = sphi 0, %s269
      %s291 = sphi 0, %s293
      %s294 = sphi 0, %s291
      %s295 = sphi 0, %s294
      %s311 = sphi 0, %s295
      %s317 = sphi 0, %s319
      %s320 = sphi 0, %s317
      %s321 = sphi 0, %s320
      %s337 = sphi 0, %s321
      %s343 = sphi 0, %s345
      %s346 = sphi 0, %s343
      %s347 = sphi 0, %s346
      %s363 = sphi 0, %s347
      %s369 = sphi 0, %s371
      %s372 = sphi 0, %s369
      %s373 = sphi 0, %s372
      %s389 = sphi 0, %s373
      %s395 = sphi 0, %s397
      %s398 = sphi 0, %s395
      %s399 = sphi 0, %s398
      %s415 = sphi 0, %s399
      %s421 = sphi 0, %s423
      %s424 = sphi 0, %s421
      %s425 = sphi 0, %s424
      %s441 = sphi 0, %s425
    $region4: #{tpu_custom_call.1} parent=1 // loop_header_branch
      %38 = sbr.rel (%p36) target = $region8
    $region5: #{tpu_custom_call.1} parent=1 // loop_body
      %s40 = ssub.s32 %s35, 1
      %s41 = ssub.s32 %s35, 2
      %s48 = sadd.s32 1, %s43
      %p49 = scmp.ge.s32.totalorder %s48, 2
      %s50 = scalar_select %p49, 0, %s48
      %s51 = sadd.s32 1, %s42
      %s52 = scalar_select %p49, %s51, %s42
      %p53 = scmp.ge.s32.totalorder %s52, 2
      %s54 = scalar_select %p53, 0, %s52
      %s55 = ssub.s32 %s42, %s54
      %p56 = scmp.eq.s32.totalorder %s55, 0
      %s58 = sadd.s32 %s57, 1
      %s59 = scalar_select %p56, %s57, %s58
      %p62 = pneg %p56
      %p63 = scmp.eq.s32.totalorder %s35, 3
      %p64 = por %p62, %p63
      %p65 = scmp.ne.s32.totalorder %s57, %s60
      %p66 = scmp.eq.s32.totalorder %s35, 0
      %p67 = por %p65, %p66
      %p68 = scmp.ne.s32.totalorder %s57, %s60
      %p69 = scmp.eq.s32.totalorder %s40, 3
      %p70 = por %p68, %p69
      %p71 = scmp.ne.s32.totalorder %s60, %s61
      %p72 = scmp.eq.s32.totalorder %s40, 0
      %p73 = por %p71, %p72
      %p74 = scmp.ne.s32.totalorder %s60, %s61
      %p75 = scmp.eq.s32.totalorder %s41, 3
      %p76 = por %p74, %p75
      %p78 = scmp.ne.s32.totalorder %s61, %s77
      %p79 = scmp.eq.s32.totalorder %s41, 0
      %p80 = por %p78, %p79
      %s81 = ssub.s32 %s43, %s50
      %p82 = scmp.eq.s32.totalorder %s81, 0
      %s84 = sadd.s32 %s83, 1
      %s85 = scalar_select %p82, %s83, %s84
      %p88 = pneg %p82
      %p89 = scmp.eq.s32.totalorder %s35, 3
      %p90 = por %p88, %p89
      %p91 = scmp.ne.s32.totalorder %s83, %s86
      %p92 = scmp.eq.s32.totalorder %s35, 0
      %p93 = por %p91, %p92
      %p94 = scmp.ne.s32.totalorder %s83, %s86
      %p95 = scmp.eq.s32.totalorder %s40, 3
      %p96 = por %p94, %p95
      %p97 = scmp.ne.s32.totalorder %s86, %s87
      %p98 = scmp.eq.s32.totalorder %s40, 0
      %p99 = por %p97, %p98
      %p100 = scmp.ne.s32.totalorder %s86, %s87
      %p101 = scmp.eq.s32.totalorder %s41, 3
      %p102 = por %p100, %p101
      %p104 = scmp.ne.s32.totalorder %s87, %s103
      %p105 = scmp.eq.s32.totalorder %s41, 0
      %p106 = por %p104, %p105
      %s107 = ssub.s32 %s43, %s50
      %p108 = scmp.eq.s32.totalorder %s107, 0
      %s110 = sadd.s32 %s109, 1
      %s111 = scalar_select %p108, %s109, %s110
      %p114 = pneg %p108
      %p115 = scmp.eq.s32.totalorder %s35, 3
      %p116 = por %p114, %p115
      %p117 = scmp.ne.s32.totalorder %s109, %s112
      %p118 = scmp.eq.s32.totalorder %s35, 0
      %p119 = por %p117, %p118
      %p120 = scmp.ne.s32.totalorder %s109, %s112
      %p121 = scmp.eq.s32.totalorder %s40, 3
      %p122 = por %p120, %p121
      %p123 = scmp.ne.s32.totalorder %s112, %s113
      %p124 = scmp.eq.s32.totalorder %s40, 0
      %p125 = por %p123, %p124
      %p126 = scmp.ne.s32.totalorder %s112, %s113
      %p127 = scmp.eq.s32.totalorder %s41, 3
      %p128 = por %p126, %p127
      %p130 = scmp.ne.s32.totalorder %s113, %s129
      %p131 = scmp.eq.s32.totalorder %s41, 0
      %p132 = por %p130, %p131
      %s133 = ssub.s32 %s43, %s50
      %p134 = scmp.eq.s32.totalorder %s133, 0
      %s136 = sadd.s32 %s135, 1
      %s137 = scalar_select %p134, %s135, %s136
      %p140 = pneg %p134
      %p141 = scmp.eq.s32.totalorder %s35, 3
      %p142 = por %p140, %p141
      %p143 = scmp.ne.s32.totalorder %s135, %s138
      %p144 = scmp.eq.s32.totalorder %s35, 0
      %p145 = por %p143, %p144
      %p146 = scmp.ne.s32.totalorder %s135, %s138
      %p147 = scmp.eq.s32.totalorder %s40, 3
      %p148 = por %p146, %p147
      %p149 = scmp.ne.s32.totalorder %s138, %s139
      %p150 = scmp.eq.s32.totalorder %s40, 0
      %p151 = por %p149, %p150
      %p152 = scmp.ne.s32.totalorder %s138, %s139
      %p153 = scmp.eq.s32.totalorder %s41, 3
      %p154 = por %p152, %p153
      %p156 = scmp.ne.s32.totalorder %s139, %s155
      %p157 = scmp.eq.s32.totalorder %s41, 0
      %p158 = por %p156, %p157
      %s159 = ssub.s32 %s43, %s50
      %p160 = scmp.eq.s32.totalorder %s159, 0
      %s162 = sadd.s32 %s161, 1
      %s163 = scalar_select %p160, %s161, %s162
      %p166 = pneg %p160
      %p167 = scmp.eq.s32.totalorder %s35, 3
      %p168 = por %p166, %p167
      %p169 = scmp.ne.s32.totalorder %s161, %s164
      %p170 = scmp.eq.s32.totalorder %s35, 0
      %p171 = por %p169, %p170
      %p172 = scmp.ne.s32.totalorder %s161, %s164
      %p173 = scmp.eq.s32.totalorder %s40, 3
      %p174 = por %p172, %p173
      %p175 = scmp.ne.s32.totalorder %s164, %s165
      %p176 = scmp.eq.s32.totalorder %s40, 0
      %p177 = por %p175, %p176
      %p178 = scmp.ne.s32.totalorder %s164, %s165
      %p179 = scmp.eq.s32.totalorder %s41, 3
      %p180 = por %p178, %p179
      %p182 = scmp.ne.s32.totalorder %s165, %s181
      %p183 = scmp.eq.s32.totalorder %s41, 0
      %p184 = por %p182, %p183
      %s185 = ssub.s32 %s43, %s50
      %p186 = scmp.eq.s32.totalorder %s185, 0
      %s188 = sadd.s32 %s187, 1
      %s189 = scalar_select %p186, %s187, %s188
      %p192 = pneg %p186
      %p193 = scmp.eq.s32.totalorder %s35, 3
      %p194 = por %p192, %p193
      %p195 = scmp.ne.s32.totalorder %s187, %s190
      %p196 = scmp.eq.s32.totalorder %s35, 0
      %p197 = por %p195, %p196
      %p198 = scmp.ne.s32.totalorder %s187, %s190
      %p199 = scmp.eq.s32.totalorder %s40, 3
      %p200 = por %p198, %p199
      %p201 = scmp.ne.s32.totalorder %s190, %s191
      %p202 = scmp.eq.s32.totalorder %s40, 0
      %p203 = por %p201, %p202
      %p204 = scmp.ne.s32.totalorder %s190, %s191
      %p205 = scmp.eq.s32.totalorder %s41, 3
      %p206 = por %p204, %p205
      %p208 = scmp.ne.s32.totalorder %s191, %s207
      %p209 = scmp.eq.s32.totalorder %s41, 0
      %p210 = por %p208, %p209
      %s211 = ssub.s32 %s43, %s50
      %p212 = scmp.eq.s32.totalorder %s211, 0
      %s214 = sadd.s32 %s213, 1
      %s215 = scalar_select %p212, %s213, %s214
      %p218 = pneg %p212
      %p219 = scmp.eq.s32.totalorder %s35, 3
      %p220 = por %p218, %p219
      %p221 = scmp.ne.s32.totalorder %s213, %s216
      %p222 = scmp.eq.s32.totalorder %s35, 0
      %p223 = por %p221, %p222
      %p224 = scmp.ne.s32.totalorder %s213, %s216
      %p225 = scmp.eq.s32.totalorder %s40, 3
      %p226 = por %p224, %p225
      %p227 = scmp.ne.s32.totalorder %s216, %s217
      %p228 = scmp.eq.s32.totalorder %s40, 0
      %p229 = por %p227, %p228
      %p230 = scmp.ne.s32.totalorder %s216, %s217
      %p231 = scmp.eq.s32.totalorder %s41, 3
      %p232 = por %p230, %p231
      %p234 = scmp.ne.s32.totalorder %s217, %s233
      %p235 = scmp.eq.s32.totalorder %s41, 0
      %p236 = por %p234, %p235
      %s237 = ssub.s32 %s43, %s50
      %p238 = scmp.eq.s32.totalorder %s237, 0
      %s240 = sadd.s32 %s239, 1
      %s241 = scalar_select %p238, %s239, %s240
      %p244 = pneg %p238
      %p245 = scmp.eq.s32.totalorder %s35, 3
      %p246 = por %p244, %p245
      %p247 = scmp.ne.s32.totalorder %s239, %s242
      %p248 = scmp.eq.s32.totalorder %s35, 0
      %p249 = por %p247, %p248
      %p250 = scmp.ne.s32.totalorder %s239, %s242
      %p251 = scmp.eq.s32.totalorder %s40, 3
      %p252 = por %p250, %p251
      %p253 = scmp.ne.s32.totalorder %s242, %s243
      %p254 = scmp.eq.s32.totalorder %s40, 0
      %p255 = por %p253, %p254
      %p256 = scmp.ne.s32.totalorder %s242, %s243
      %p257 = scmp.eq.s32.totalorder %s41, 3
      %p258 = por %p256, %p257
      %p260 = scmp.ne.s32.totalorder %s243, %s259
      %p261 = scmp.eq.s32.totalorder %s41, 0
      %p262 = por %p260, %p261
      %s263 = ssub.s32 %s43, %s50
      %p264 = scmp.eq.s32.totalorder %s263, 0
      %s266 = sadd.s32 %s265, 1
      %s267 = scalar_select %p264, %s265, %s266
      %p270 = pneg %p264
      %p271 = scmp.eq.s32.totalorder %s35, 3
      %p272 = por %p270, %p271
      %p273 = scmp.ne.s32.totalorder %s265, %s268
      %p274 = scmp.eq.s32.totalorder %s35, 0
      %p275 = por %p273, %p274
      %p276 = scmp.ne.s32.totalorder %s265, %s268
      %p277 = scmp.eq.s32.totalorder %s40, 3
      %p278 = por %p276, %p277
      %p279 = scmp.ne.s32.totalorder %s268, %s269
      %p280 = scmp.eq.s32.totalorder %s40, 0
      %p281 = por %p279, %p280
      %p282 = scmp.ne.s32.totalorder %s268, %s269
      %p283 = scmp.eq.s32.totalorder %s41, 3
      %p284 = por %p282, %p283
      %p286 = scmp.ne.s32.totalorder %s269, %s285
      %p287 = scmp.eq.s32.totalorder %s41, 0
      %p288 = por %p286, %p287
      %s289 = ssub.s32 %s43, %s50
      %p290 = scmp.eq.s32.totalorder %s289, 0
      %s292 = sadd.s32 %s291, 1
      %s293 = scalar_select %p290, %s291, %s292
      %p296 = pneg %p290
      %p297 = scmp.eq.s32.totalorder %s35, 3
      %p298 = por %p296, %p297
      %p299 = scmp.ne.s32.totalorder %s291, %s294
      %p300 = scmp.eq.s32.totalorder %s35, 0
      %p301 = por %p299, %p300
      %p302 = scmp.ne.s32.totalorder %s291, %s294
      %p303 = scmp.eq.s32.totalorder %s40, 3
      %p304 = por %p302, %p303
      %p305 = scmp.ne.s32.totalorder %s294, %s295
      %p306 = scmp.eq.s32.totalorder %s40, 0
      %p307 = por %p305, %p306
      %p308 = scmp.ne.s32.totalorder %s294, %s295
      %p309 = scmp.eq.s32.totalorder %s41, 3
      %p310 = por %p308, %p309
      %p312 = scmp.ne.s32.totalorder %s295, %s311
      %p313 = scmp.eq.s32.totalorder %s41, 0
      %p314 = por %p312, %p313
      %s315 = ssub.s32 %s43, %s50
      %p316 = scmp.eq.s32.totalorder %s315, 0
      %s318 = sadd.s32 %s317, 1
      %s319 = scalar_select %p316, %s317, %s318
      %p322 = pneg %p316
      %p323 = scmp.eq.s32.totalorder %s35, 3
      %p324 = por %p322, %p323
      %p325 = scmp.ne.s32.totalorder %s317, %s320
      %p326 = scmp.eq.s32.totalorder %s35, 0
      %p327 = por %p325, %p326
      %p328 = scmp.ne.s32.totalorder %s317, %s320
      %p329 = scmp.eq.s32.totalorder %s40, 3
      %p330 = por %p328, %p329
      %p331 = scmp.ne.s32.totalorder %s320, %s321
      %p332 = scmp.eq.s32.totalorder %s40, 0
      %p333 = por %p331, %p332
      %p334 = scmp.ne.s32.totalorder %s320, %s321
      %p335 = scmp.eq.s32.totalorder %s41, 3
      %p336 = por %p334, %p335
      %p338 = scmp.ne.s32.totalorder %s321, %s337
      %p339 = scmp.eq.s32.totalorder %s41, 0
      %p340 = por %p338, %p339
      %s341 = ssub.s32 %s43, %s50
      %p342 = scmp.eq.s32.totalorder %s341, 0
      %s344 = sadd.s32 %s343, 1
      %s345 = scalar_select %p342, %s343, %s344
      %p348 = pneg %p342
      %p349 = scmp.eq.s32.totalorder %s35, 3
      %p350 = por %p348, %p349
      %p351 = scmp.ne.s32.totalorder %s343, %s346
      %p352 = scmp.eq.s32.totalorder %s35, 0
      %p353 = por %p351, %p352
      %p354 = scmp.ne.s32.totalorder %s343, %s346
      %p355 = scmp.eq.s32.totalorder %s40, 3
      %p356 = por %p354, %p355
      %p357 = scmp.ne.s32.totalorder %s346, %s347
      %p358 = scmp.eq.s32.totalorder %s40, 0
      %p359 = por %p357, %p358
      %p360 = scmp.ne.s32.totalorder %s346, %s347
      %p361 = scmp.eq.s32.totalorder %s41, 3
      %p362 = por %p360, %p361
      %p364 = scmp.ne.s32.totalorder %s347, %s363
      %p365 = scmp.eq.s32.totalorder %s41, 0
      %p366 = por %p364, %p365
      %s367 = ssub.s32 %s43, %s50
      %p368 = scmp.eq.s32.totalorder %s367, 0
      %s370 = sadd.s32 %s369, 1
      %s371 = scalar_select %p368, %s369, %s370
      %p374 = pneg %p368
      %p375 = scmp.eq.s32.totalorder %s35, 3
      %p376 = por %p374, %p375
      %p377 = scmp.ne.s32.totalorder %s369, %s372
      %p378 = scmp.eq.s32.totalorder %s35, 0
      %p379 = por %p377, %p378
      %p380 = scmp.ne.s32.totalorder %s369, %s372
      %p381 = scmp.eq.s32.totalorder %s40, 3
      %p382 = por %p380, %p381
      %p383 = scmp.ne.s32.totalorder %s372, %s373
      %p384 = scmp.eq.s32.totalorder %s40, 0
      %p385 = por %p383, %p384
      %p386 = scmp.ne.s32.totalorder %s372, %s373
      %p387 = scmp.eq.s32.totalorder %s41, 3
      %p388 = por %p386, %p387
      %p390 = scmp.ne.s32.totalorder %s373, %s389
      %p391 = scmp.eq.s32.totalorder %s41, 0
      %p392 = por %p390, %p391
      %s393 = ssub.s32 %s43, %s50
      %p394 = scmp.eq.s32.totalorder %s393, 0
      %s396 = sadd.s32 %s395, 1
      %s397 = scalar_select %p394, %s395, %s396
      %p400 = pneg %p394
      %p401 = scmp.eq.s32.totalorder %s35, 3
      %p402 = por %p400, %p401
      %p403 = scmp.ne.s32.totalorder %s395, %s398
      %p404 = scmp.eq.s32.totalorder %s35, 0
      %p405 = por %p403, %p404
      %p406 = scmp.ne.s32.totalorder %s395, %s398
      %p407 = scmp.eq.s32.totalorder %s40, 3
      %p408 = por %p406, %p407
      %p409 = scmp.ne.s32.totalorder %s398, %s399
      %p410 = scmp.eq.s32.totalorder %s40, 0
      %p411 = por %p409, %p410
      %p412 = scmp.ne.s32.totalorder %s398, %s399
      %p413 = scmp.eq.s32.totalorder %s41, 3
      %p414 = por %p412, %p413
      %p416 = scmp.ne.s32.totalorder %s399, %s415
      %p417 = scmp.eq.s32.totalorder %s41, 0
      %p418 = por %p416, %p417
      %s419 = ssub.s32 %s42, %s54
      %p420 = scmp.eq.s32.totalorder %s419, 0
      %s422 = sadd.s32 %s421, 1
      %s423 = scalar_select %p420, %s421, %s422
      %p426 = pneg %p420
      %p427 = scmp.eq.s32.totalorder %s35, 3
      %p428 = por %p426, %p427
      %p429 = scmp.ne.s32.totalorder %s421, %s424
      %p430 = scmp.eq.s32.totalorder %s35, 0
      %p431 = por %p429, %p430
      %p432 = scmp.ne.s32.totalorder %s421, %s424
      %p433 = scmp.eq.s32.totalorder %s40, 3
      %p434 = por %p432, %p433
      %p435 = scmp.ne.s32.totalorder %s424, %s425
      %p436 = scmp.eq.s32.totalorder %s40, 0
      %p437 = por %p435, %p436
      %p438 = scmp.ne.s32.totalorder %s424, %s425
      %p439 = scmp.eq.s32.totalorder %s41, 3
      %p440 = por %p438, %p439
      %p442 = scmp.ne.s32.totalorder %s425, %s441
      %p443 = scmp.eq.s32.totalorder %s41, 0
      %p444 = por %p442, %p443
      %p445 = scmp.le.s32.totalorder 1, %s35
      %p446 = scmp.lt.s32.totalorder %s35, 5
      %p447 = pnand %p445, %p446
      %p448 = pneg %p447
      // Predicated region
      $region9: #{tpu_custom_call.1} parent=5 // pred_check
        _
      $region10: #{tpu_custom_call.1} parent=5 // pred_check_branch
        %450 = sbr.rel (%p447) target = $region12
      $region11: #{tpu_custom_call.1} parent=5 // pred_region
        %s451 = ssub.s32 %s35, 1
      $region12: #{tpu_custom_call.1} parent=5 // pred_fallthru
        _
      %p452 = scmp.lt.s32.totalorder %s35, 4
      // Predicated region
      $region13: #{tpu_custom_call.1} parent=5 // pred_check
        %p453 = pneg %p452
      $region14: #{tpu_custom_call.1} parent=5 // pred_check_branch
        %455 = sbr.rel (%p453) target = $region16
      $region15: #{tpu_custom_call.1} parent=5 // pred_region
        // Predicated region
        $region17: #{tpu_custom_call.1} parent=15 // pred_check
          %p456 = pneg %p67
        $region18: #{tpu_custom_call.1} parent=15 // pred_check_branch
          %458 = sbr.rel (%p456) target = $region20
        $region19: #{tpu_custom_call.1} parent=15 // pred_region
          %s459 = sand.u32 %s57, 1
          %s460 = scalar_lea.sflag [#allocation4], %s459
          %s461 = sand.u32 %s57, 1
          %s462 = smul.addr %s461, 8
          %s463 = scalar_lea.vmem [#allocation3], %s462
          %s465 = ssub.s32 128, 128
          %466 = vsyncadd %s460, %s465
          %s467 = smul.addr %s42, 128
          %s468 = scalar_lea.hbm %s0, %s467
          %s470 = sshll.u32 %s463, 4
          %s471 = int_to_ptr.vmem [resolvable:$true] %s470
          %473 = dma.hbm_to_vmem [thread:$0]  %s468, 128, %s471, %s460
        $region20: #{tpu_custom_call.1} parent=15 // pred_fallthru
          _
        // Predicated region
        $region21: #{tpu_custom_call.1} parent=15 // pred_check
          %p474 = pneg %p93
        $region22: #{tpu_custom_call.1} parent=15 // pred_check_branch
          %476 = sbr.rel (%p474) target = $region24
        $region23: #{tpu_custom_call.1} parent=15 // pred_region
          %s477 = sand.u32 %s35, 1
          %s478 = scalar_lea.sflag [#allocation7], %s477
          %s479 = sand.u32 %s83, 1
          %s480 = smul.addr %s479, 128
          %s481 = scalar_lea.vmem [#allocation6], %s480
          %s483 = ssub.s32 2048, 2048
          %484 = vsyncadd %s478, %s483
          %s485 = smul.addr %s43, 16
          %s486 = smul.addr %s485, 128
          %s487 = scalar_lea.hbm %s1, %s486
          %s488 = sshll.u32 %s481, 4
          %s489 = int_to_ptr.vmem [resolvable:$true] %s488
          %494 = dma.hbm_to_vmem [thread:$0]  %s487, 2048, %s489, %s478, 128, 128, 8
        $region24: #{tpu_custom_call.1} parent=15 // pred_fallthru
          _
        // Predicated region
        $region25: #{tpu_custom_call.1} parent=15 // pred_check
          %p495 = pneg %p119
        $region26: #{tpu_custom_call.1} parent=15 // pred_check_branch
          %497 = sbr.rel (%p495) target = $region28
        $region27: #{tpu_custom_call.1} parent=15 // pred_region
          %s498 = sand.u32 %s35, 1
          %s499 = scalar_lea.sflag [#allocation7], %s498
          %s500 = sand.u32 %s109, 1
          %s501 = smul.addr %s500, 128
          %s502 = scalar_lea.vmem [#allocation8], %s501
          %s504 = ssub.s32 2048, 2048
          %505 = vsyncadd %s499, %s504
          %s506 = smul.addr %s43, 16
          %s507 = smul.addr %s506, 128
          %s508 = scalar_lea.hbm %s2, %s507
          %s509 = sshll.u32 %s502, 4
          %s510 = int_to_ptr.vmem [resolvable:$true] %s509
          %515 = dma.hbm_to_vmem [thread:$0]  %s508, 2048, %s510, %s499, 128, 128, 8
        $region28: #{tpu_custom_call.1} parent=15 // pred_fallthru
          _
        // Predicated region
        $region29: #{tpu_custom_call.1} parent=15 // pred_check
          %p516 = pneg %p145
        $region30: #{tpu_custom_call.1} parent=15 // pred_check_branch
          %518 = sbr.rel (%p516) target = $region32
        $region31: #{tpu_custom_call.1} parent=15 // pred_region
          %s519 = sand.u32 %s35, 1
          %s520 = scalar_lea.sflag [#allocation10], %s519
          %s521 = sand.u32 %s135, 1
          %s522 = smul.addr %s521, 128
          %s523 = scalar_lea.vmem [#allocation9], %s522
          %s525 = ssub.s32 2048, 2048
          %526 = vsyncadd %s520, %s525
          %s527 = smul.addr %s43, 16
          %s528 = smul.addr %s527, 128
          %s529 = scalar_lea.hbm %s3, %s528
          %s530 = sshll.u32 %s523, 4
          %s531 = int_to_ptr.vmem [resolvable:$true] %s530
          %536 = dma.hbm_to_vmem [thread:$0]  %s529, 2048, %s531, %s520, 128, 128, 8
        $region32: #{tpu_custom_call.1} parent=15 // pred_fallthru
          _
        // Predicated region
        $region33: #{tpu_custom_call.1} parent=15 // pred_check
          %p537 = pneg %p171
        $region34: #{tpu_custom_call.1} parent=15 // pred_check_branch
          %539 = sbr.rel (%p537) target = $region36
        $region35: #{tpu_custom_call.1} parent=15 // pred_region
          %s540 = sand.u32 %s35, 1
          %s541 = scalar_lea.sflag [#allocation10], %s540
          %s542 = sand.u32 %s161, 1
          %s543 = smul.addr %s542, 128
          %s544 = scalar_lea.vmem [#allocation11], %s543
          %s546 = ssub.s32 2048, 2048
          %547 = vsyncadd %s541, %s546
          %s548 = smul.addr %s43, 16
          %s549 = smul.addr %s548, 128
          %s550 = scalar_lea.hbm %s4, %s549
          %s551 = sshll.u32 %s544, 4
          %s552 = int_to_ptr.vmem [resolvable:$true] %s551
          %557 = dma.hbm_to_vmem [thread:$0]  %s550, 2048, %s552, %s541, 128, 128, 8
        $region36: #{tpu_custom_call.1} parent=15 // pred_fallthru
          _
        // Predicated region
        $region37: #{tpu_custom_call.1} parent=15 // pred_check
          %p558 = pneg %p197
        $region38: #{tpu_custom_call.1} parent=15 // pred_check_branch
          %560 = sbr.rel (%p558) target = $region40
        $region39: #{tpu_custom_call.1} parent=15 // pred_region
          %p561 = scmp.lt.s32.totalorder %s43, 1
          %s562 = scalar_select %p561, %s43, 1
          %s563 = scalar_lea.vmem %s5, %s562
        $region40: #{tpu_custom_call.1} parent=15 // pred_fallthru
          _
        // Predicated region
        $region41: #{tpu_custom_call.1} parent=15 // pred_check
          %p564 = pneg %p223
        $region42: #{tpu_custom_call.1} parent=15 // pred_check_branch
          %566 = sbr.rel (%p564) target = $region44
        $region43: #{tpu_custom_call.1} parent=15 // pred_region
          %p567 = scmp.lt.s32.totalorder %s43, 1
          %s568 = scalar_select %p567, %s43, 1
          %s569 = scalar_lea.vmem %s6, %s568
        $region44: #{tpu_custom_call.1} parent=15 // pred_fallthru
          _
        // Predicated region
        $region45: #{tpu_custom_call.1} parent=15 // pred_check
          %p570 = pneg %p249
        $region46: #{tpu_custom_call.1} parent=15 // pred_check_branch
          %572 = sbr.rel (%p570) target = $region48
        $region47: #{tpu_custom_call.1} parent=15 // pred_region
          %p573 = scmp.lt.s32.totalorder %s43, 1
          %s574 = scalar_select %p573, %s43, 1
          %s575 = scalar_lea.vmem %s7, %s574
        $region48: #{tpu_custom_call.1} parent=15 // pred_fallthru
          _
        // Predicated region
        $region49: #{tpu_custom_call.1} parent=15 // pred_check
          %p576 = pneg %p275
        $region50: #{tpu_custom_call.1} parent=15 // pred_check_branch
          %578 = sbr.rel (%p576) target = $region52
        $region51: #{tpu_custom_call.1} parent=15 // pred_region
          %s579 = sand.u32 %s35, 1
          %s580 = scalar_lea.sflag [#allocation13], %s579
          %s581 = sand.u32 %s265, 1
          %s582 = smul.addr %s581, 128
          %s583 = scalar_lea.vmem [#allocation12], %s582
          %s585 = ssub.s32 2048, 2048
          %586 = vsyncadd %s580, %s585
          %s587 = smul.addr %s43, 16
          %s588 = smul.addr %s587, 128
          %s589 = scalar_lea.hbm %s8, %s588
          %s590 = sshll.u32 %s583, 4
          %s591 = int_to_ptr.vmem [resolvable:$true] %s590
          %596 = dma.hbm_to_vmem [thread:$0]  %s589, 2048, %s591, %s580, 128, 128, 8
        $region52: #{tpu_custom_call.1} parent=15 // pred_fallthru
          _
        // Predicated region
        $region53: #{tpu_custom_call.1} parent=15 // pred_check
          %p597 = pneg %p301
        $region54: #{tpu_custom_call.1} parent=15 // pred_check_branch
          %599 = sbr.rel (%p597) target = $region56
        $region55: #{tpu_custom_call.1} parent=15 // pred_region
          %p600 = scmp.lt.s32.totalorder %s43, 1
          %s601 = scalar_select %p600, %s43, 1
          %s602 = scalar_lea.vmem %s9, %s601
        $region56: #{tpu_custom_call.1} parent=15 // pred_fallthru
          _
        // Predicated region
        $region57: #{tpu_custom_call.1} parent=15 // pred_check
          %p603 = pneg %p327
        $region58: #{tpu_custom_call.1} parent=15 // pred_check_branch
          %605 = sbr.rel (%p603) target = $region60
        $region59: #{tpu_custom_call.1} parent=15 // pred_region
          %s606 = sand.u32 %s35, 1
          %s607 = scalar_lea.sflag [#allocation13], %s606
          %s608 = sand.u32 %s317, 1
          %s609 = smul.addr %s608, 128
          %s610 = scalar_lea.vmem [#allocation14], %s609
          %s612 = ssub.s32 2048, 2048
          %613 = vsyncadd %s607, %s612
          %s614 = smul.addr %s43, 16
          %s615 = smul.addr %s614, 128
          %s616 = scalar_lea.hbm %s10, %s615
          %s617 = sshll.u32 %s610, 4
          %s618 = int_to_ptr.vmem [resolvable:$true] %s617
          %623 = dma.hbm_to_vmem [thread:$0]  %s616, 2048, %s618, %s607, 128, 128, 8
        $region60: #{tpu_custom_call.1} parent=15 // pred_fallthru
          _
        // Predicated region
        $region61: #{tpu_custom_call.1} parent=15 // pred_check
          %p624 = pneg %p353
        $region62: #{tpu_custom_call.1} parent=15 // pred_check_branch
          %626 = sbr.rel (%p624) target = $region64
        $region63: #{tpu_custom_call.1} parent=15 // pred_region
          %p627 = scmp.lt.s32.totalorder %s43, 1
          %s628 = scalar_select %p627, %s43, 1
          %s629 = scalar_lea.vmem %s11, %s628
        $region64: #{tpu_custom_call.1} parent=15 // pred_fallthru
          _
        // Predicated region
        $region65: #{tpu_custom_call.1} parent=15 // pred_check
          %p630 = pneg %p379
        $region66: #{tpu_custom_call.1} parent=15 // pred_check_branch
          %632 = sbr.rel (%p630) target = $region68
        $region67: #{tpu_custom_call.1} parent=15 // pred_region
          %p633 = scmp.lt.s32.totalorder %s43, 1
          %s634 = scalar_select %p633, %s43, 1
          %s635 = scalar_lea.vmem %s12, %s634
        $region68: #{tpu_custom_call.1} parent=15 // pred_fallthru
          _
        // Predicated region
        $region69: #{tpu_custom_call.1} parent=15 // pred_check
          %p636 = pneg %p405
        $region70: #{tpu_custom_call.1} parent=15 // pred_check_branch
          %638 = sbr.rel (%p636) target = $region72
        $region71: #{tpu_custom_call.1} parent=15 // pred_region
          %p639 = scmp.lt.s32.totalorder %s43, 1
          %s640 = scalar_select %p639, %s43, 1
          %s641 = scalar_lea.vmem %s13, %s640
        $region72: #{tpu_custom_call.1} parent=15 // pred_fallthru
          _
      $region16: #{tpu_custom_call.1} parent=5 // pred_fallthru
        _
      %p642 = scmp.le.s32.totalorder 1, %s35
      %p643 = scmp.lt.s32.totalorder %s35, 5
      %p644 = pnand %p642, %p643
      %p645 = pneg %p644
      // Predicated region
      $region73: #{tpu_custom_call.1} parent=5 // pred_check
        _
      $region74: #{tpu_custom_call.1} parent=5 // pred_check_branch
        %647 = sbr.rel (%p644) target = $region76
      $region75: #{tpu_custom_call.1} parent=5 // pred_region
        %s648 = ssub.s32 %s35, 1
        %s649 = sand.u32 %s60, 1
        %s650 = scalar_lea.sflag [#allocation4], %s649
        %s651 = sand.u32 %s60, 1
        %s652 = smul.addr %s651, 8
        %s653 = scalar_lea.vmem [#allocation3], %s652
        // Predicated region
        $region77: #{tpu_custom_call.1} parent=75 // pred_check
          %p654 = pneg %p73
        $region78: #{tpu_custom_call.1} parent=75 // pred_check_branch
          %656 = sbr.rel (%p654) target = $region80
        $region79: #{tpu_custom_call.1} parent=75 // pred_region
          %657 = dma.done %s650, 128
        $region80: #{tpu_custom_call.1} parent=75 // pred_fallthru
          _
        %s658 = sand.u32 %s40, 1
        %s659 = scalar_lea.sflag [#allocation7], %s658
        %s660 = sand.u32 %s86, 1
        %s661 = smul.addr %s660, 128
        %s662 = scalar_lea.vmem [#allocation6], %s661
        // Predicated region
        $region81: #{tpu_custom_call.1} parent=75 // pred_check
          %p663 = pneg %p99
        $region82: #{tpu_custom_call.1} parent=75 // pred_check_branch
          %665 = sbr.rel (%p663) target = $region84
        $region83: #{tpu_custom_call.1} parent=75 // pred_region
          %666 = dma.done %s659, 2048
        $region84: #{tpu_custom_call.1} parent=75 // pred_fallthru
          _
        %s667 = sand.u32 %s40, 1
        %s668 = scalar_lea.sflag [#allocation7], %s667
        %s669 = sand.u32 %s112, 1
        %s670 = smul.addr %s669, 128
        %s671 = scalar_lea.vmem [#allocation8], %s670
        // Predicated region
        $region85: #{tpu_custom_call.1} parent=75 // pred_check
          %p672 = pneg %p125
        $region86: #{tpu_custom_call.1} parent=75 // pred_check_branch
          %674 = sbr.rel (%p672) target = $region88
        $region87: #{tpu_custom_call.1} parent=75 // pred_region
          %675 = dma.done %s668, 2048
        $region88: #{tpu_custom_call.1} parent=75 // pred_fallthru
          _
        %s676 = sand.u32 %s40, 1
        %s677 = scalar_lea.sflag [#allocation10], %s676
        %s678 = sand.u32 %s138, 1
        %s679 = smul.addr %s678, 128
        %s680 = scalar_lea.vmem [#allocation9], %s679
        // Predicated region
        $region89: #{tpu_custom_call.1} parent=75 // pred_check
          %p681 = pneg %p151
        $region90: #{tpu_custom_call.1} parent=75 // pred_check_branch
          %683 = sbr.rel (%p681) target = $region92
        $region91: #{tpu_custom_call.1} parent=75 // pred_region
          %684 = dma.done %s677, 2048
        $region92: #{tpu_custom_call.1} parent=75 // pred_fallthru
          _
        %s685 = sand.u32 %s40, 1
        %s686 = scalar_lea.sflag [#allocation10], %s685
        %s687 = sand.u32 %s164, 1
        %s688 = smul.addr %s687, 128
        %s689 = scalar_lea.vmem [#allocation11], %s688
        // Predicated region
        $region93: #{tpu_custom_call.1} parent=75 // pred_check
          %p690 = pneg %p177
        $region94: #{tpu_custom_call.1} parent=75 // pred_check_branch
          %692 = sbr.rel (%p690) target = $region96
        $region95: #{tpu_custom_call.1} parent=75 // pred_region
          %693 = dma.done %s686, 2048
        $region96: #{tpu_custom_call.1} parent=75 // pred_fallthru
          _
        %s694 = sand.u32 %s40, 1
        %s695 = scalar_lea.sflag [#allocation13], %s694
        %s696 = sand.u32 %s268, 1
        %s697 = smul.addr %s696, 128
        %s698 = scalar_lea.vmem [#allocation12], %s697
        // Predicated region
        $region97: #{tpu_custom_call.1} parent=75 // pred_check
          %p699 = pneg %p281
        $region98: #{tpu_custom_call.1} parent=75 // pred_check_branch
          %701 = sbr.rel (%p699) target = $region100
        $region99: #{tpu_custom_call.1} parent=75 // pred_region
          %702 = dma.done %s695, 2048
        $region100: #{tpu_custom_call.1} parent=75 // pred_fallthru
          _
        %s703 = sand.u32 %s40, 1
        %s704 = scalar_lea.sflag [#allocation13], %s703
        %s705 = sand.u32 %s320, 1
        %s706 = smul.addr %s705, 128
        %s707 = scalar_lea.vmem [#allocation14], %s706
        // Predicated region
        $region101: #{tpu_custom_call.1} parent=75 // pred_check
          %p708 = pneg %p333
        $region102: #{tpu_custom_call.1} parent=75 // pred_check_branch
          %710 = sbr.rel (%p708) target = $region104
        $region103: #{tpu_custom_call.1} parent=75 // pred_region
          %711 = dma.done %s704, 2048
        $region104: #{tpu_custom_call.1} parent=75 // pred_fallthru
          _
        %s712 = sand.u32 %s60, 1
        %s713 = scalar_lea.sflag [#allocation4], %s712
        %s714 = sand.u32 %s60, 1
        %s715 = smul.addr %s714, 8
        %s716 = scalar_lea.vmem [#allocation3], %s715
        %p717 = pneg %p73
        %p718 = pneg %p70
        %s719 = sand.u32 %s40, 1
        %s720 = scalar_lea.sflag [#allocation7], %s719
        %s721 = sand.u32 %s86, 1
        %s722 = smul.addr %s721, 128
        %s723 = scalar_lea.vmem [#allocation6], %s722
        %p724 = pneg %p99
        %p725 = pneg %p96
        %s726 = sand.u32 %s40, 1
        %s727 = scalar_lea.sflag [#allocation7], %s726
        %s728 = sand.u32 %s112, 1
        %s729 = smul.addr %s728, 128
        %s730 = scalar_lea.vmem [#allocation8], %s729
        %p731 = pneg %p125
        %p732 = pneg %p122
        %s733 = sand.u32 %s40, 1
        %s734 = scalar_lea.sflag [#allocation10], %s733
        %s735 = sand.u32 %s138, 1
        %s736 = smul.addr %s735, 128
        %s737 = scalar_lea.vmem [#allocation9], %s736
        %p738 = pneg %p151
        %p739 = pneg %p148
        %s740 = sand.u32 %s40, 1
        %s741 = scalar_lea.sflag [#allocation10], %s740
        %s742 = sand.u32 %s164, 1
        %s743 = smul.addr %s742, 128
        %s744 = scalar_lea.vmem [#allocation11], %s743
        %p745 = pneg %p177
        %p746 = pneg %p174
        %p747 = scmp.lt.s32.totalorder %s45, 1
        %s748 = scalar_select %p747, %s45, 1
        %s749 = scalar_lea.vmem %s5, %s748
        %p750 = pneg %p203
        %p751 = pneg %p200
        %p752 = scmp.lt.s32.totalorder %s45, 1
        %s753 = scalar_select %p752, %s45, 1
        %s754 = scalar_lea.vmem %s6, %s753
        %p755 = pneg %p229
        %p756 = pneg %p226
        %p757 = scmp.lt.s32.totalorder %s45, 1
        %s758 = scalar_select %p757, %s45, 1
        %s759 = scalar_lea.vmem %s7, %s758
        %p760 = pneg %p255
        %p761 = pneg %p252
        %s762 = sand.u32 %s40, 1
        %s763 = scalar_lea.sflag [#allocation13], %s762
        %s764 = sand.u32 %s268, 1
        %s765 = smul.addr %s764, 128
        %s766 = scalar_lea.vmem [#allocation12], %s765
        %p767 = pneg %p281
        %p768 = pneg %p278
        %p769 = scmp.lt.s32.totalorder %s45, 1
        %s770 = scalar_select %p769, %s45, 1
        %s771 = scalar_lea.vmem %s9, %s770
        %p772 = pneg %p307
        %p773 = pneg %p304
        %s774 = sand.u32 %s40, 1
        %s775 = scalar_lea.sflag [#allocation13], %s774
        %s776 = sand.u32 %s320, 1
        %s777 = smul.addr %s776, 128
        %s778 = scalar_lea.vmem [#allocation14], %s777
        %p779 = pneg %p333
        %p780 = pneg %p330
        %p781 = scmp.lt.s32.totalorder %s45, 1
        %s782 = scalar_select %p781, %s45, 1
        %s783 = scalar_lea.vmem %s11, %s782
        %p784 = pneg %p359
        %p785 = pneg %p356
        %p786 = scmp.lt.s32.totalorder %s45, 1
        %s787 = scalar_select %p786, %s45, 1
        %s788 = scalar_lea.vmem %s12, %s787
        %p789 = pneg %p385
        %p790 = pneg %p382
        %p791 = scmp.lt.s32.totalorder %s45, 1
        %s792 = scalar_select %p791, %s45, 1
        %s793 = scalar_lea.vmem %s13, %s792
        %p794 = pneg %p411
        %p795 = pneg %p408
        %p796 = pneg %p437
        %p797 = pneg %p434
        %s798 = sand.u32 %s424, 1
        %s799 = scalar_lea.sflag [#allocation5], %s798
        %s800 = sand.u32 %s424, 1
        %s801 = smul.addr %s800, 8
        %s802 = scalar_lea.vmem [#allocation15], %s801
        %p803 = scmp.lt.s32.totalorder %s45, 1
        %s804 = scalar_select %p803, %s45, 1
        %s805 = scalar_lea.vmem %s5, %s804
        %p806 = scmp.lt.s32.totalorder %s45, 1
        %s807 = scalar_select %p806, %s45, 1
        %s808 = scalar_lea.vmem %s6, %s807
        %p809 = scmp.lt.s32.totalorder %s45, 1
        %s810 = scalar_select %p809, %s45, 1
        %s811 = scalar_lea.vmem %s7, %s810
        %p812 = scmp.lt.s32.totalorder %s45, 1
        %s813 = scalar_select %p812, %s45, 1
        %s814 = scalar_lea.vmem %s9, %s813
        %p815 = scmp.lt.s32.totalorder %s45, 1
        %s816 = scalar_select %p815, %s45, 1
        %s817 = scalar_lea.vmem %s11, %s816
        %p818 = scmp.lt.s32.totalorder %s45, 1
        %s819 = scalar_select %p818, %s45, 1
        %s820 = scalar_lea.vmem %s12, %s819
        %p821 = scmp.lt.s32.totalorder %s45, 1
        %s822 = scalar_select %p821, %s45, 1
        %s823 = scalar_lea.vmem %s13, %s822
        %p824 = scmp.eq.s32.totalorder %s45, 0
        // Predicated region
        $region105: #{tpu_custom_call.1} parent=75 // pred_check
          %p825 = pneg %p824
        $region106: #{tpu_custom_call.1} parent=75 // pred_check_branch
          %827 = sbr.rel (%p825) target = $region108
        $region107: #{tpu_custom_call.1} parent=75 // pred_region
          %v828 = vld [vmem:[%s653] sm:$0xff]
          %829 = vst [vmem:[%s802] sm:$0xff] %v828
        $region108: #{tpu_custom_call.1} parent=75 // pred_fallthru
          _
        %v830 = vld [vmem:[%s802] sm:$0xff]
        %v831 = vld [vmem:[%s662] sm:$0xff]
        %v832 = vld [vmem:[%s662 + $0x8] sm:$0xff]
        %v833 = vld [vmem:[%s662 + $0x10] sm:$0xff]
        %v834 = vld [vmem:[%s662 + $0x18] sm:$0xff]
        %v835 = vld [vmem:[%s662 + $0x20] sm:$0xff]
        %v836 = vld [vmem:[%s662 + $0x28] sm:$0xff]
        %v837 = vld [vmem:[%s662 + $0x30] sm:$0xff]
        %v838 = vld [vmem:[%s662 + $0x38] sm:$0xff]
        %v839 = vld [vmem:[%s662 + $0x40] sm:$0xff]
        %v840 = vld [vmem:[%s662 + $0x48] sm:$0xff]
        %v841 = vld [vmem:[%s662 + $0x50] sm:$0xff]
        %v842 = vld [vmem:[%s662 + $0x58] sm:$0xff]
        %v843 = vld [vmem:[%s662 + $0x60] sm:$0xff]
        %v844 = vld [vmem:[%s662 + $0x68] sm:$0xff]
        %v845 = vld [vmem:[%s662 + $0x70] sm:$0xff]
        %v846 = vld [vmem:[%s662 + $0x78] sm:$0xff]
        %847 = vmatprep.subr.mxu0 0.0
        %848 = vmatpush1.msra.mxu0 %v846
        %849 = vmatprep.subr.mxu0 0.0
        %850 = vmatpush1.msra.mxu0 %v845
        %851 = vmatprep.subr.mxu0 0.0
        %852 = vmatpush1.msra.mxu0 %v844
        %853 = vmatprep.subr.mxu0 0.0
        %854 = vmatpush1.msra.mxu0 %v843
        %855 = vmatprep.subr.mxu0 0.0
        %856 = vmatpush1.msra.mxu0 %v842
        %857 = vmatprep.subr.mxu0 0.0
        %858 = vmatpush1.msra.mxu0 %v841
        %859 = vmatprep.subr.mxu0 0.0
        %860 = vmatpush1.msra.mxu0 %v840
        %861 = vmatprep.subr.mxu0 0.0
        %862 = vmatpush1.msra.mxu0 %v839
        %863 = vmatprep.subr.mxu0 0.0
        %864 = vmatpush1.msra.mxu0 %v838
        %865 = vmatprep.subr.mxu0 0.0
        %866 = vmatpush1.msra.mxu0 %v837
        %867 = vmatprep.subr.mxu0 0.0
        %868 = vmatpush1.msra.mxu0 %v836
        %869 = vmatprep.subr.mxu0 0.0
        %870 = vmatpush1.msra.mxu0 %v835
        %871 = vmatprep.subr.mxu0 0.0
        %872 = vmatpush1.msra.mxu0 %v834
        %873 = vmatprep.subr.mxu0 0.0
        %874 = vmatpush1.msra.mxu0 %v833
        %875 = vmatprep.subr.mxu0 0.0
        %876 = vmatpush1.msra.mxu0 %v832
        %877 = vmatprep.subr.mxu0 0.0
        %878 = vmatpush1.msra.mxu0 %v831
        %879 = vmatprep.subr.mxu0 0.0
        %880 = vmatpush2.msra.mxu0 0.0
        %881 = vmatprep.subr.mxu0 0.0
        %882 = vmatpush2.msra.mxu0 0.0
        %883 = vmatprep.subr.mxu0 0.0
        %884 = vmatpush2.msra.mxu0 0.0
        %885 = vmatprep.subr.mxu0 0.0
        %886 = vmatpush2.msra.mxu0 0.0
        %887 = vmatprep.subr.mxu0 0.0
        %888 = vmatpush2.msra.mxu0 0.0
        %889 = vmatprep.subr.mxu0 0.0
        %890 = vmatpush2.msra.mxu0 0.0
        %891 = vmatprep.subr.mxu0 0.0
        %892 = vmatpush2.msra.mxu0 0.0
        %893 = vmatprep.subr.mxu0 0.0
        %894 = vmatpush2.msra.mxu0 0.0
        %895 = vmatprep.subr.mxu0 0.0
        %896 = vmatpush2.msra.mxu0 0.0
        %897 = vmatprep.subr.mxu0 0.0
        %898 = vmatpush2.msra.mxu0 0.0
        %899 = vmatprep.subr.mxu0 0.0
        %900 = vmatpush2.msra.mxu0 0.0
        %901 = vmatprep.subr.mxu0 0.0
        %902 = vmatpush2.msra.mxu0 0.0
        %903 = vmatprep.subr.mxu0 0.0
        %904 = vmatpush2.msra.mxu0 0.0
        %905 = vmatprep.subr.mxu0 0.0
        %906 = vmatpush2.msra.mxu0 0.0
        %907 = vmatprep.subr.mxu0 0.0
        %908 = vmatpush2.msra.mxu0 0.0
        %909 = vmatprep.subr.mxu0 0.0
        %910 = vmatpush2.msra.mxu0 0.0
        %911 = vmatprep.mubr.f32.mxu0 0.0
        %912 = vmatmul.mubr.f32.gmra.mxu0 %v830
        %v913 = vpop.f32.mrf.mxu0
        %v914 = vadd.f32 0.0, %v913
        %v915 = vpop.f32.mrf.mxu0
        %916 = vdwg.mxu0
        %v917 = vld [vmem:[%s671] sm:$0xff]
        %v918 = vld [vmem:[%s671 + $0x8] sm:$0xff]
        %v919 = vld [vmem:[%s671 + $0x10] sm:$0xff]
        %v920 = vld [vmem:[%s671 + $0x18] sm:$0xff]
        %v921 = vld [vmem:[%s671 + $0x20] sm:$0xff]
        %v922 = vld [vmem:[%s671 + $0x28] sm:$0xff]
        %v923 = vld [vmem:[%s671 + $0x30] sm:$0xff]
        %v924 = vld [vmem:[%s671 + $0x38] sm:$0xff]
        %v925 = vld [vmem:[%s671 + $0x40] sm:$0xff]
        %v926 = vld [vmem:[%s671 + $0x48] sm:$0xff]
        %v927 = vld [vmem:[%s671 + $0x50] sm:$0xff]
        %v928 = vld [vmem:[%s671 + $0x58] sm:$0xff]
        %v929 = vld [vmem:[%s671 + $0x60] sm:$0xff]
        %v930 = vld [vmem:[%s671 + $0x68] sm:$0xff]
        %v931 = vld [vmem:[%s671 + $0x70] sm:$0xff]
        %v932 = vld [vmem:[%s671 + $0x78] sm:$0xff]
        %933 = vmatprep.subr.mxu0 0.0
        %934 = vmatpush1.msra.mxu0 %v932
        %935 = vmatprep.subr.mxu0 0.0
        %936 = vmatpush1.msra.mxu0 %v931
        %937 = vmatprep.subr.mxu0 0.0
        %938 = vmatpush1.msra.mxu0 %v930
        %939 = vmatprep.subr.mxu0 0.0
        %940 = vmatpush1.msra.mxu0 %v929
        %941 = vmatprep.subr.mxu0 0.0
        %942 = vmatpush1.msra.mxu0 %v928
        %943 = vmatprep.subr.mxu0 0.0
        %944 = vmatpush1.msra.mxu0 %v927
        %945 = vmatprep.subr.mxu0 0.0
        %946 = vmatpush1.msra.mxu0 %v926
        %947 = vmatprep.subr.mxu0 0.0
        %948 = vmatpush1.msra.mxu0 %v925
        %949 = vmatprep.subr.mxu0 0.0
        %950 = vmatpush1.msra.mxu0 %v924
        %951 = vmatprep.subr.mxu0 0.0
        %952 = vmatpush1.msra.mxu0 %v923
        %953 = vmatprep.subr.mxu0 0.0
        %954 = vmatpush1.msra.mxu0 %v922
        %955 = vmatprep.subr.mxu0 0.0
        %956 = vmatpush1.msra.mxu0 %v921
        %957 = vmatprep.subr.mxu0 0.0
        %958 = vmatpush1.msra.mxu0 %v920
        %959 = vmatprep.subr.mxu0 0.0
        %960 = vmatpush1.msra.mxu0 %v919
        %961 = vmatprep.subr.mxu0 0.0
        %962 = vmatpush1.msra.mxu0 %v918
        %963 = vmatprep.subr.mxu0 0.0
        %964 = vmatpush1.msra.mxu0 %v917
        %965 = vmatprep.subr.mxu0 0.0
        %966 = vmatpush2.msra.mxu0 0.0
        %967 = vmatprep.subr.mxu0 0.0
        %968 = vmatpush2.msra.mxu0 0.0
        %969 = vmatprep.subr.mxu0 0.0
        %970 = vmatpush2.msra.mxu0 0.0
        %971 = vmatprep.subr.mxu0 0.0
        %972 = vmatpush2.msra.mxu0 0.0
        %973 = vmatprep.subr.mxu0 0.0
        %974 = vmatpush2.msra.mxu0 0.0
        %975 = vmatprep.subr.mxu0 0.0
        %976 = vmatpush2.msra.mxu0 0.0
        %977 = vmatprep.subr.mxu0 0.0
        %978 = vmatpush2.msra.mxu0 0.0
        %979 = vmatprep.subr.mxu0 0.0
        %980 = vmatpush2.msra.mxu0 0.0
        %981 = vmatprep.subr.mxu0 0.0
        %982 = vmatpush2.msra.mxu0 0.0
        %983 = vmatprep.subr.mxu0 0.0
        %984 = vmatpush2.msra.mxu0 0.0
        %985 = vmatprep.subr.mxu0 0.0
        %986 = vmatpush2.msra.mxu0 0.0
        %987 = vmatprep.subr.mxu0 0.0
        %988 = vmatpush2.msra.mxu0 0.0
        %989 = vmatprep.subr.mxu0 0.0
        %990 = vmatpush2.msra.mxu0 0.0
        %991 = vmatprep.subr.mxu0 0.0
        %992 = vmatpush2.msra.mxu0 0.0
        %993 = vmatprep.subr.mxu0 0.0
        %994 = vmatpush2.msra.mxu0 0.0
        %995 = vmatprep.subr.mxu0 0.0
        %996 = vmatpush2.msra.mxu0 0.0
        %997 = vmatprep.mubr.f32.mxu0 0.0
        %998 = vmatmul.mubr.f32.gmra.mxu0 %v830
        %v999 = vpop.f32.mrf.mxu0
        %v1000 = vadd.f32 0.0, %v999
        %v1001 = vpop.f32.mrf.mxu0
        %1002 = vdwg.mxu0
        %v1003 = vld [vmem:[%s680] sm:$0xff]
        %v1004 = vld [vmem:[%s680 + $0x8] sm:$0xff]
        %v1005 = vld [vmem:[%s680 + $0x10] sm:$0xff]
        %v1006 = vld [vmem:[%s680 + $0x18] sm:$0xff]
        %v1007 = vld [vmem:[%s680 + $0x20] sm:$0xff]
        %v1008 = vld [vmem:[%s680 + $0x28] sm:$0xff]
        %v1009 = vld [vmem:[%s680 + $0x30] sm:$0xff]
        %v1010 = vld [vmem:[%s680 + $0x38] sm:$0xff]
        %v1011 = vld [vmem:[%s680 + $0x40] sm:$0xff]
        %v1012 = vld [vmem:[%s680 + $0x48] sm:$0xff]
        %v1013 = vld [vmem:[%s680 + $0x50] sm:$0xff]
        %v1014 = vld [vmem:[%s680 + $0x58] sm:$0xff]
        %v1015 = vld [vmem:[%s680 + $0x60] sm:$0xff]
        %v1016 = vld [vmem:[%s680 + $0x68] sm:$0xff]
        %v1017 = vld [vmem:[%s680 + $0x70] sm:$0xff]
        %v1018 = vld [vmem:[%s680 + $0x78] sm:$0xff]
        %1019 = vmatprep.subr.mxu0 0.0
        %1020 = vmatpush1.msra.mxu0 %v1018
        %1021 = vmatprep.subr.mxu0 0.0
        %1022 = vmatpush1.msra.mxu0 %v1017
        %1023 = vmatprep.subr.mxu0 0.0
        %1024 = vmatpush1.msra.mxu0 %v1016
        %1025 = vmatprep.subr.mxu0 0.0
        %1026 = vmatpush1.msra.mxu0 %v1015
        %1027 = vmatprep.subr.mxu0 0.0
        %1028 = vmatpush1.msra.mxu0 %v1014
        %1029 = vmatprep.subr.mxu0 0.0
        %1030 = vmatpush1.msra.mxu0 %v1013
        %1031 = vmatprep.subr.mxu0 0.0
        %1032 = vmatpush1.msra.mxu0 %v1012
        %1033 = vmatprep.subr.mxu0 0.0
        %1034 = vmatpush1.msra.mxu0 %v1011
        %1035 = vmatprep.subr.mxu0 0.0
        %1036 = vmatpush1.msra.mxu0 %v1010
        %1037 = vmatprep.subr.mxu0 0.0
        %1038 = vmatpush1.msra.mxu0 %v1009
        %1039 = vmatprep.subr.mxu0 0.0
        %1040 = vmatpush1.msra.mxu0 %v1008
        %1041 = vmatprep.subr.mxu0 0.0
        %1042 = vmatpush1.msra.mxu0 %v1007
        %1043 = vmatprep.subr.mxu0 0.0
        %1044 = vmatpush1.msra.mxu0 %v1006
        %1045 = vmatprep.subr.mxu0 0.0
        %1046 = vmatpush1.msra.mxu0 %v1005
        %1047 = vmatprep.subr.mxu0 0.0
        %1048 = vmatpush1.msra.mxu0 %v1004
        %1049 = vmatprep.subr.mxu0 0.0
        %1050 = vmatpush1.msra.mxu0 %v1003
        %1051 = vmatprep.subr.mxu0 0.0
        %1052 = vmatpush2.msra.mxu0 0.0
        %1053 = vmatprep.subr.mxu0 0.0
        %1054 = vmatpush2.msra.mxu0 0.0
        %1055 = vmatprep.subr.mxu0 0.0
        %1056 = vmatpush2.msra.mxu0 0.0
        %1057 = vmatprep.subr.mxu0 0.0
        %1058 = vmatpush2.msra.mxu0 0.0
        %1059 = vmatprep.subr.mxu0 0.0
        %1060 = vmatpush2.msra.mxu0 0.0
        %1061 = vmatprep.subr.mxu0 0.0
        %1062 = vmatpush2.msra.mxu0 0.0
        %1063 = vmatprep.subr.mxu0 0.0
        %1064 = vmatpush2.msra.mxu0 0.0
        %1065 = vmatprep.subr.mxu0 0.0
        %1066 = vmatpush2.msra.mxu0 0.0
        %1067 = vmatprep.subr.mxu0 0.0
        %1068 = vmatpush2.msra.mxu0 0.0
        %1069 = vmatprep.subr.mxu0 0.0
        %1070 = vmatpush2.msra.mxu0 0.0
        %1071 = vmatprep.subr.mxu0 0.0
        %1072 = vmatpush2.msra.mxu0 0.0
        %1073 = vmatprep.subr.mxu0 0.0
        %1074 = vmatpush2.msra.mxu0 0.0
        %1075 = vmatprep.subr.mxu0 0.0
        %1076 = vmatpush2.msra.mxu0 0.0
        %1077 = vmatprep.subr.mxu0 0.0
        %1078 = vmatpush2.msra.mxu0 0.0
        %1079 = vmatprep.subr.mxu0 0.0
        %1080 = vmatpush2.msra.mxu0 0.0
        %1081 = vmatprep.subr.mxu0 0.0
        %1082 = vmatpush2.msra.mxu0 0.0
        %1083 = vmatprep.mubr.f32.mxu0 0.0
        %1084 = vmatmul.mubr.f32.gmra.mxu0 %v830
        %v1085 = vpop.f32.mrf.mxu0
        %v1086 = vadd.f32 0.0, %v1085
        %v1087 = vpop.f32.mrf.mxu0
        %1088 = vdwg.mxu0
        %v1089 = vlaneseq
        %v1090 = vshrl.u32 %v1089, 7
        %v1091 = vlaneseq
        %v1092 = vand.u32 %v1091, 127
        %vm1093 = vcmp.gt.s32.totalorder %v1092, %v1090
        %v1094 = vsel %vm1093, -1e+30, 0.0
        %vm1095 = vcmask 261120
        %v1097 = vsel %vm1095, %v914, 0
        %v1100 = vsel %vm1095, %v1000, 0
        %1102 = vmatprep.subr.mxu0 0.0
        %1103 = vmatpush1.xpose.msra.mxu0 0.0
        %1104 = vmatprep.subr.mxu0 0.0
        %1105 = vmatpush1.xpose.msra.mxu0 0.0
        %1106 = vmatprep.subr.mxu0 0.0
        %1107 = vmatpush1.xpose.msra.mxu0 0.0
        %1108 = vmatprep.subr.mxu0 0.0
        %1109 = vmatpush1.xpose.msra.mxu0 0.0
        %1110 = vmatprep.subr.mxu0 0.0
        %1111 = vmatpush1.xpose.msra.mxu0 0.0
        %1112 = vmatprep.subr.mxu0 0.0
        %1113 = vmatpush1.xpose.msra.mxu0 0.0
        %1114 = vmatprep.subr.mxu0 0.0
        %1115 = vmatpush1.xpose.msra.mxu0 0.0
        %1116 = vmatprep.subr.mxu0 0.0
        %1117 = vmatpush1.xpose.msra.mxu0 0.0
        %1118 = vmatprep.subr.mxu0 0.0
        %1119 = vmatpush1.xpose.msra.mxu0 0.0
        %1120 = vmatprep.subr.mxu0 0.0
        %1121 = vmatpush1.xpose.msra.mxu0 0.0
        %1122 = vmatprep.subr.mxu0 0.0
        %1123 = vmatpush1.xpose.msra.mxu0 0.0
        %1124 = vmatprep.subr.mxu0 0.0
        %1125 = vmatpush1.xpose.msra.mxu0 0.0
        %1126 = vmatprep.subr.mxu0 0.0
        %1127 = vmatpush1.xpose.msra.mxu0 0.0
        %1128 = vmatprep.subr.mxu0 0.0
        %1129 = vmatpush1.xpose.msra.mxu0 0.0
        %1130 = vmatprep.subr.mxu0 0.0
        %1131 = vmatpush1.xpose.msra.mxu0 0.0
        %1132 = vmatprep.subr.mxu0 0.0
        %1133 = vmatpush1.xpose.msra.mxu0 %v1100
        %1134 = vmatprep.subr.mxu0 0.0
        %1135 = vmatpush2.xpose.msra.mxu0 0.0
        %1136 = vmatprep.subr.mxu0 0.0
        %1137 = vmatpush2.xpose.msra.mxu0 0.0
        %1138 = vmatprep.subr.mxu0 0.0
        %1139 = vmatpush2.xpose.msra.mxu0 0.0
        %1140 = vmatprep.subr.mxu0 0.0
        %1141 = vmatpush2.xpose.msra.mxu0 0.0
        %1142 = vmatprep.subr.mxu0 0.0
        %1143 = vmatpush2.xpose.msra.mxu0 0.0
        %1144 = vmatprep.subr.mxu0 0.0
        %1145 = vmatpush2.xpose.msra.mxu0 0.0
        %1146 = vmatprep.subr.mxu0 0.0
        %1147 = vmatpush2.xpose.msra.mxu0 0.0
        %1148 = vmatprep.subr.mxu0 0.0
        %1149 = vmatpush2.xpose.msra.mxu0 0.0
        %1150 = vmatprep.subr.mxu0 0.0
        %1151 = vmatpush2.xpose.msra.mxu0 0.0
        %1152 = vmatprep.subr.mxu0 0.0
        %1153 = vmatpush2.xpose.msra.mxu0 0.0
        %1154 = vmatprep.subr.mxu0 0.0
        %1155 = vmatpush2.xpose.msra.mxu0 0.0
        %1156 = vmatprep.subr.mxu0 0.0
        %1157 = vmatpush2.xpose.msra.mxu0 0.0
        %1158 = vmatprep.subr.mxu0 0.0
        %1159 = vmatpush2.xpose.msra.mxu0 0.0
        %1160 = vmatprep.subr.mxu0 0.0
        %1161 = vmatpush2.xpose.msra.mxu0 0.0
        %1162 = vmatprep.subr.mxu0 0.0
        %1163 = vmatpush2.xpose.msra.mxu0 0.0
        %1164 = vmatprep.subr.mxu0 0.0
        %1165 = vmatpush2.xpose.msra.mxu0 0.0
        %1166 = vmatprep.mubr.f32.mxu0 0.0
        %1167 = vmatmul.mubr.f32.gmra.mxu0 %v1097
        %v1168 = vpop.f32.mrf.mxu0
        %v1169 = vadd.f32 %v1094, %v1168
        %v1170 = vpop.f32.mrf.mxu0
        %1171 = vdwg.mxu0
        %vm1172 = vcmask 64512
        %v1173 = vsel %vm1172, %v1169, -inf
        %1174 = vmax.xlane.f32.xlu0 %v1173
        %v1175 = vpop.xlane.xlu0 %1174
        %v1176 = vsub.f32 %v1169, %v1175
        %v1177 = vmul.f32 %v1176, 1.442695
        %v1178 = vpow.pop %v1177
        %v1179 = vsel %vm1172, %v1178, 0.0
        %1180 = vadd.xlane.f32.xlu0 %v1179
        %v1181 = vpop.xlane.xlu0 %1180
        %v1182 = vrcp.pop %v1181
        %v1183 = vmul.f32 %v1178, %v1182
        %v1185 = vsel %vm1172, %v1183, 0
        %1187 = vmatprep.subr.mxu0 0.0
        %1188 = vmatpush1.msra.mxu0 0.0
        %1189 = vmatprep.subr.mxu0 0.0
        %1190 = vmatpush1.msra.mxu0 0.0
        %1191 = vmatprep.subr.mxu0 0.0
        %1192 = vmatpush1.msra.mxu0 0.0
        %1193 = vmatprep.subr.mxu0 0.0
        %1194 = vmatpush1.msra.mxu0 0.0
        %1195 = vmatprep.subr.mxu0 0.0
        %1196 = vmatpush1.msra.mxu0 0.0
        %1197 = vmatprep.subr.mxu0 0.0
        %1198 = vmatpush1.msra.mxu0 0.0
        %1199 = vmatprep.subr.mxu0 0.0
        %1200 = vmatpush1.msra.mxu0 0.0
        %1201 = vmatprep.subr.mxu0 0.0
        %1202 = vmatpush1.msra.mxu0 0.0
        %1203 = vmatprep.subr.mxu0 0.0
        %1204 = vmatpush1.msra.mxu0 0.0
        %1205 = vmatprep.subr.mxu0 0.0
        %1206 = vmatpush1.msra.mxu0 0.0
        %1207 = vmatprep.subr.mxu0 0.0
        %1208 = vmatpush1.msra.mxu0 0.0
        %1209 = vmatprep.subr.mxu0 0.0
        %1210 = vmatpush1.msra.mxu0 0.0
        %1211 = vmatprep.subr.mxu0 0.0
        %1212 = vmatpush1.msra.mxu0 0.0
        %1213 = vmatprep.subr.mxu0 0.0
        %1214 = vmatpush1.msra.mxu0 0.0
        %1215 = vmatprep.subr.mxu0 0.0
        %1216 = vmatpush1.msra.mxu0 0.0
        %1217 = vmatprep.subr.mxu0 0.0
        %1218 = vmatpush1.msra.mxu0 %v1086
        %1219 = vmatprep.subr.mxu0 0.0
        %1220 = vmatpush2.msra.mxu0 0.0
        %1221 = vmatprep.subr.mxu0 0.0
        %1222 = vmatpush2.msra.mxu0 0.0
        %1223 = vmatprep.subr.mxu0 0.0
        %1224 = vmatpush2.msra.mxu0 0.0
        %1225 = vmatprep.subr.mxu0 0.0
        %1226 = vmatpush2.msra.mxu0 0.0
        %1227 = vmatprep.subr.mxu0 0.0
        %1228 = vmatpush2.msra.mxu0 0.0
        %1229 = vmatprep.subr.mxu0 0.0
        %1230 = vmatpush2.msra.mxu0 0.0
        %1231 = vmatprep.subr.mxu0 0.0
        %1232 = vmatpush2.msra.mxu0 0.0
        %1233 = vmatprep.subr.mxu0 0.0
        %1234 = vmatpush2.msra.mxu0 0.0
        %1235 = vmatprep.subr.mxu0 0.0
        %1236 = vmatpush2.msra.mxu0 0.0
        %1237 = vmatprep.subr.mxu0 0.0
        %1238 = vmatpush2.msra.mxu0 0.0
        %1239 = vmatprep.subr.mxu0 0.0
        %1240 = vmatpush2.msra.mxu0 0.0
        %1241 = vmatprep.subr.mxu0 0.0
        %1242 = vmatpush2.msra.mxu0 0.0
        %1243 = vmatprep.subr.mxu0 0.0
        %1244 = vmatpush2.msra.mxu0 0.0
        %1245 = vmatprep.subr.mxu0 0.0
        %1246 = vmatpush2.msra.mxu0 0.0
        %1247 = vmatprep.subr.mxu0 0.0
        %1248 = vmatpush2.msra.mxu0 0.0
        %1249 = vmatprep.subr.mxu0 0.0
        %1250 = vmatpush2.msra.mxu0 0.0
        %1251 = vmatprep.mubr.f32.mxu0 0.0
        %1252 = vmatmul.mubr.f32.gmra.mxu0 %v1185
        %v1253 = vpop.f32.mrf.mxu0
        %v1254 = vadd.f32 0.0, %v1253
        %v1255 = vpop.f32.mrf.mxu0
        %1256 = vdwg.mxu0
        %1257 = vst.msk [vmem:[#allocation2] sm:$0xff] %vm1095, %v1254
        %1258 = vrot.lane.b32.xlu0 %v914, 96
        %v1259 = vpop.permute.xlu0 %1258
        %1260 = vrot.lane.b32.xlu0 %v1000, 96
        %v1261 = vpop.permute.xlu0 %1260
        %v1262 = vsel %vm1095, %v1259, 0
        %v1264 = vsel %vm1095, %v1261, 0
        %1266 = vmatprep.subr.mxu0 0.0
        %1267 = vmatpush1.xpose.msra.mxu0 0.0
        %1268 = vmatprep.subr.mxu0 0.0
        %1269 = vmatpush1.xpose.msra.mxu0 0.0
        %1270 = vmatprep.subr.mxu0 0.0
        %1271 = vmatpush1.xpose.msra.mxu0 0.0
        %1272 = vmatprep.subr.mxu0 0.0
        %1273 = vmatpush1.xpose.msra.mxu0 0.0
        %1274 = vmatprep.subr.mxu0 0.0
        %1275 = vmatpush1.xpose.msra.mxu0 0.0
        %1276 = vmatprep.subr.mxu0 0.0
        %1277 = vmatpush1.xpose.msra.mxu0 0.0
        %1278 = vmatprep.subr.mxu0 0.0
        %1279 = vmatpush1.xpose.msra.mxu0 0.0
        %1280 = vmatprep.subr.mxu0 0.0
        %1281 = vmatpush1.xpose.msra.mxu0 0.0
        %1282 = vmatprep.subr.mxu0 0.0
        %1283 = vmatpush1.xpose.msra.mxu0 0.0
        %1284 = vmatprep.subr.mxu0 0.0
        %1285 = vmatpush1.xpose.msra.mxu0 0.0
        %1286 = vmatprep.subr.mxu0 0.0
        %1287 = vmatpush1.xpose.msra.mxu0 0.0
        %1288 = vmatprep.subr.mxu0 0.0
        %1289 = vmatpush1.xpose.msra.mxu0 0.0
        %1290 = vmatprep.subr.mxu0 0.0
        %1291 = vmatpush1.xpose.msra.mxu0 0.0
        %1292 = vmatprep.subr.mxu0 0.0
        %1293 = vmatpush1.xpose.msra.mxu0 0.0
        %1294 = vmatprep.subr.mxu0 0.0
        %1295 = vmatpush1.xpose.msra.mxu0 0.0
        %1296 = vmatprep.subr.mxu0 0.0
        %1297 = vmatpush1.xpose.msra.mxu0 %v1264
        %1298 = vmatprep.subr.mxu0 0.0
        %1299 = vmatpush2.xpose.msra.mxu0 0.0
        %1300 = vmatprep.subr.mxu0 0.0
        %1301 = vmatpush2.xpose.msra.mxu0 0.0
        %1302 = vmatprep.subr.mxu0 0.0
        %1303 = vmatpush2.xpose.msra.mxu0 0.0
        %1304 = vmatprep.subr.mxu0 0.0
        %1305 = vmatpush2.xpose.msra.mxu0 0.0
        %1306 = vmatprep.subr.mxu0 0.0
        %1307 = vmatpush2.xpose.msra.mxu0 0.0
        %1308 = vmatprep.subr.mxu0 0.0
        %1309 = vmatpush2.xpose.msra.mxu0 0.0
        %1310 = vmatprep.subr.mxu0 0.0
        %1311 = vmatpush2.xpose.msra.mxu0 0.0
        %1312 = vmatprep.subr.mxu0 0.0
        %1313 = vmatpush2.xpose.msra.mxu0 0.0
        %1314 = vmatprep.subr.mxu0 0.0
        %1315 = vmatpush2.xpose.msra.mxu0 0.0
        %1316 = vmatprep.subr.mxu0 0.0
        %1317 = vmatpush2.xpose.msra.mxu0 0.0
        %1318 = vmatprep.subr.mxu0 0.0
        %1319 = vmatpush2.xpose.msra.mxu0 0.0
        %1320 = vmatprep.subr.mxu0 0.0
        %1321 = vmatpush2.xpose.msra.mxu0 0.0
        %1322 = vmatprep.subr.mxu0 0.0
        %1323 = vmatpush2.xpose.msra.mxu0 0.0
        %1324 = vmatprep.subr.mxu0 0.0
        %1325 = vmatpush2.xpose.msra.mxu0 0.0
        %1326 = vmatprep.subr.mxu0 0.0
        %1327 = vmatpush2.xpose.msra.mxu0 0.0
        %1328 = vmatprep.subr.mxu0 0.0
        %1329 = vmatpush2.xpose.msra.mxu0 0.0
        %1330 = vmatprep.mubr.f32.mxu0 0.0
        %1331 = vmatmul.mubr.f32.gmra.mxu0 %v1262
        %v1332 = vpop.f32.mrf.mxu0
        %v1333 = vadd.f32 %v1094, %v1332
        %v1334 = vpop.f32.mrf.mxu0
        %1335 = vdwg.mxu0
        %v1336 = vsel %vm1172, %v1333, -inf
        %1337 = vmax.xlane.f32.xlu0 %v1336
        %v1338 = vpop.xlane.xlu0 %1337
        %v1339 = vsub.f32 %v1333, %v1338
        %v1340 = vmul.f32 %v1339, 1.442695
        %v1341 = vpow.pop %v1340
        %v1342 = vsel %vm1172, %v1341, 0.0
        %1343 = vadd.xlane.f32.xlu0 %v1342
        %v1344 = vpop.xlane.xlu0 %1343
        %v1345 = vrcp.pop %v1344
        %v1346 = vmul.f32 %v1341, %v1345
        %1348 = vrot.lane.b32.xlu0 %v1086, 96
        %v1349 = vpop.permute.xlu0 %1348
        %v1352 = vsel %vm1172, %v1346, 0
        %1354 = vmatprep.subr.mxu0 0.0
        %1355 = vmatpush1.msra.mxu0 0.0
        %1356 = vmatprep.subr.mxu0 0.0
        %1357 = vmatpush1.msra.mxu0 0.0
        %1358 = vmatprep.subr.mxu0 0.0
        %1359 = vmatpush1.msra.mxu0 0.0
        %1360 = vmatprep.subr.mxu0 0.0
        %1361 = vmatpush1.msra.mxu0 0.0
        %1362 = vmatprep.subr.mxu0 0.0
        %1363 = vmatpush1.msra.mxu0 0.0
        %1364 = vmatprep.subr.mxu0 0.0
        %1365 = vmatpush1.msra.mxu0 0.0
        %1366 = vmatprep.subr.mxu0 0.0
        %1367 = vmatpush1.msra.mxu0 0.0
        %1368 = vmatprep.subr.mxu0 0.0
        %1369 = vmatpush1.msra.mxu0 0.0
        %1370 = vmatprep.subr.mxu0 0.0
        %1371 = vmatpush1.msra.mxu0 0.0
        %1372 = vmatprep.subr.mxu0 0.0
        %1373 = vmatpush1.msra.mxu0 0.0
        %1374 = vmatprep.subr.mxu0 0.0
        %1375 = vmatpush1.msra.mxu0 0.0
        %1376 = vmatprep.subr.mxu0 0.0
        %1377 = vmatpush1.msra.mxu0 0.0
        %1378 = vmatprep.subr.mxu0 0.0
        %1379 = vmatpush1.msra.mxu0 0.0
        %1380 = vmatprep.subr.mxu0 0.0
        %1381 = vmatpush1.msra.mxu0 0.0
        %1382 = vmatprep.subr.mxu0 0.0
        %1383 = vmatpush1.msra.mxu0 0.0
        %1384 = vmatprep.subr.mxu0 0.0
        %1385 = vmatpush1.msra.mxu0 %v1349
        %1386 = vmatprep.subr.mxu0 0.0
        %1387 = vmatpush2.msra.mxu0 0.0
        %1388 = vmatprep.subr.mxu0 0.0
        %1389 = vmatpush2.msra.mxu0 0.0
        %1390 = vmatprep.subr.mxu0 0.0
        %1391 = vmatpush2.msra.mxu0 0.0
        %1392 = vmatprep.subr.mxu0 0.0
        %1393 = vmatpush2.msra.mxu0 0.0
        %1394 = vmatprep.subr.mxu0 0.0
        %1395 = vmatpush2.msra.mxu0 0.0
        %1396 = vmatprep.subr.mxu0 0.0
        %1397 = vmatpush2.msra.mxu0 0.0
        %1398 = vmatprep.subr.mxu0 0.0
        %1399 = vmatpush2.msra.mxu0 0.0
        %1400 = vmatprep.subr.mxu0 0.0
        %1401 = vmatpush2.msra.mxu0 0.0
        %1402 = vmatprep.subr.mxu0 0.0
        %1403 = vmatpush2.msra.mxu0 0.0
        %1404 = vmatprep.subr.mxu0 0.0
        %1405 = vmatpush2.msra.mxu0 0.0
        %1406 = vmatprep.subr.mxu0 0.0
        %1407 = vmatpush2.msra.mxu0 0.0
        %1408 = vmatprep.subr.mxu0 0.0
        %1409 = vmatpush2.msra.mxu0 0.0
        %1410 = vmatprep.subr.mxu0 0.0
        %1411 = vmatpush2.msra.mxu0 0.0
        %1412 = vmatprep.subr.mxu0 0.0
        %1413 = vmatpush2.msra.mxu0 0.0
        %1414 = vmatprep.subr.mxu0 0.0
        %1415 = vmatpush2.msra.mxu0 0.0
        %1416 = vmatprep.subr.mxu0 0.0
        %1417 = vmatpush2.msra.mxu0 0.0
        %1418 = vmatprep.mubr.f32.mxu0 0.0
        %1419 = vmatmul.mubr.f32.gmra.mxu0 %v1352
        %v1420 = vpop.f32.mrf.mxu0
        %v1421 = vadd.f32 0.0, %v1420
        %v1422 = vpop.f32.mrf.mxu0
        %1423 = vdwg.mxu0
        %1425 = vrot.lane.b32.xlu0 %v1421, 32
        %v1426 = vpop.permute.xlu0 %1425
        %vm1428 = vcmask 523520
        %1429 = vst.msk [vmem:[#allocation2] sm:$0xff] %vm1428, %v1426
        %1430 = vrot.lane.b32.xlu0 %v914, 64
        %v1431 = vpop.permute.xlu0 %1430
        %1432 = vrot.lane.b32.xlu0 %v1000, 64
        %v1433 = vpop.permute.xlu0 %1432
        %v1434 = vsel %vm1095, %v1431, 0
        %v1436 = vsel %vm1095, %v1433, 0
        %1438 = vmatprep.subr.mxu0 0.0
        %1439 = vmatpush1.xpose.msra.mxu0 0.0
        %1440 = vmatprep.subr.mxu0 0.0
        %1441 = vmatpush1.xpose.msra.mxu0 0.0
        %1442 = vmatprep.subr.mxu0 0.0
        %1443 = vmatpush1.xpose.msra.mxu0 0.0
        %1444 = vmatprep.subr.mxu0 0.0
        %1445 = vmatpush1.xpose.msra.mxu0 0.0
        %1446 = vmatprep.subr.mxu0 0.0
        %1447 = vmatpush1.xpose.msra.mxu0 0.0
        %1448 = vmatprep.subr.mxu0 0.0
        %1449 = vmatpush1.xpose.msra.mxu0 0.0
        %1450 = vmatprep.subr.mxu0 0.0
        %1451 = vmatpush1.xpose.msra.mxu0 0.0
        %1452 = vmatprep.subr.mxu0 0.0
        %1453 = vmatpush1.xpose.msra.mxu0 0.0
        %1454 = vmatprep.subr.mxu0 0.0
        %1455 = vmatpush1.xpose.msra.mxu0 0.0
        %1456 = vmatprep.subr.mxu0 0.0
        %1457 = vmatpush1.xpose.msra.mxu0 0.0
        %1458 = vmatprep.subr.mxu0 0.0
        %1459 = vmatpush1.xpose.msra.mxu0 0.0
        %1460 = vmatprep.subr.mxu0 0.0
        %1461 = vmatpush1.xpose.msra.mxu0 0.0
        %1462 = vmatprep.subr.mxu0 0.0
        %1463 = vmatpush1.xpose.msra.mxu0 0.0
        %1464 = vmatprep.subr.mxu0 0.0
        %1465 = vmatpush1.xpose.msra.mxu0 0.0
        %1466 = vmatprep.subr.mxu0 0.0
        %1467 = vmatpush1.xpose.msra.mxu0 0.0
        %1468 = vmatprep.subr.mxu0 0.0
        %1469 = vmatpush1.xpose.msra.mxu0 %v1436
        %1470 = vmatprep.subr.mxu0 0.0
        %1471 = vmatpush2.xpose.msra.mxu0 0.0
        %1472 = vmatprep.subr.mxu0 0.0
        %1473 = vmatpush2.xpose.msra.mxu0 0.0
        %1474 = vmatprep.subr.mxu0 0.0
        %1475 = vmatpush2.xpose.msra.mxu0 0.0
        %1476 = vmatprep.subr.mxu0 0.0
        %1477 = vmatpush2.xpose.msra.mxu0 0.0
        %1478 = vmatprep.subr.mxu0 0.0
        %1479 = vmatpush2.xpose.msra.mxu0 0.0
        %1480 = vmatprep.subr.mxu0 0.0
        %1481 = vmatpush2.xpose.msra.mxu0 0.0
        %1482 = vmatprep.subr.mxu0 0.0
        %1483 = vmatpush2.xpose.msra.mxu0 0.0
        %1484 = vmatprep.subr.mxu0 0.0
        %1485 = vmatpush2.xpose.msra.mxu0 0.0
        %1486 = vmatprep.subr.mxu0 0.0
        %1487 = vmatpush2.xpose.msra.mxu0 0.0
        %1488 = vmatprep.subr.mxu0 0.0
        %1489 = vmatpush2.xpose.msra.mxu0 0.0
        %1490 = vmatprep.subr.mxu0 0.0
        %1491 = vmatpush2.xpose.msra.mxu0 0.0
        %1492 = vmatprep.subr.mxu0 0.0
        %1493 = vmatpush2.xpose.msra.mxu0 0.0
        %1494 = vmatprep.subr.mxu0 0.0
        %1495 = vmatpush2.xpose.msra.mxu0 0.0
        %1496 = vmatprep.subr.mxu0 0.0
        %1497 = vmatpush2.xpose.msra.mxu0 0.0
        %1498 = vmatprep.subr.mxu0 0.0
        %1499 = vmatpush2.xpose.msra.mxu0 0.0
        %1500 = vmatprep.subr.mxu0 0.0
        %1501 = vmatpush2.xpose.msra.mxu0 0.0
        %1502 = vmatprep.mubr.f32.mxu0 0.0
        %1503 = vmatmul.mubr.f32.gmra.mxu0 %v1434
        %v1504 = vpop.f32.mrf.mxu0
        %v1505 = vadd.f32 %v1094, %v1504
        %v1506 = vpop.f32.mrf.mxu0
        %1507 = vdwg.mxu0
        %v1508 = vsel %vm1172, %v1505, -inf
        %1509 = vmax.xlane.f32.xlu0 %v1508
        %v1510 = vpop.xlane.xlu0 %1509
        %v1511 = vsub.f32 %v1505, %v1510
        %v1512 = vmul.f32 %v1511, 1.442695
        %v1513 = vpow.pop %v1512
        %v1514 = vsel %vm1172, %v1513, 0.0
        %1515 = vadd.xlane.f32.xlu0 %v1514
        %v1516 = vpop.xlane.xlu0 %1515
        %v1517 = vrcp.pop %v1516
        %v1518 = vmul.f32 %v1513, %v1517
        %1519 = vrot.lane.b32.xlu0 %v1086, 64
        %v1520 = vpop.permute.xlu0 %1519
        %v1523 = vsel %vm1172, %v1518, 0
        %1525 = vmatprep.subr.mxu0 0.0
        %1526 = vmatpush1.msra.mxu0 0.0
        %1527 = vmatprep.subr.mxu0 0.0
        %1528 = vmatpush1.msra.mxu0 0.0
        %1529 = vmatprep.subr.mxu0 0.0
        %1530 = vmatpush1.msra.mxu0 0.0
        %1531 = vmatprep.subr.mxu0 0.0
        %1532 = vmatpush1.msra.mxu0 0.0
        %1533 = vmatprep.subr.mxu0 0.0
        %1534 = vmatpush1.msra.mxu0 0.0
        %1535 = vmatprep.subr.mxu0 0.0
        %1536 = vmatpush1.msra.mxu0 0.0
        %1537 = vmatprep.subr.mxu0 0.0
        %1538 = vmatpush1.msra.mxu0 0.0
        %1539 = vmatprep.subr.mxu0 0.0
        %1540 = vmatpush1.msra.mxu0 0.0
        %1541 = vmatprep.subr.mxu0 0.0
        %1542 = vmatpush1.msra.mxu0 0.0
        %1543 = vmatprep.subr.mxu0 0.0
        %1544 = vmatpush1.msra.mxu0 0.0
        %1545 = vmatprep.subr.mxu0 0.0
        %1546 = vmatpush1.msra.mxu0 0.0
        %1547 = vmatprep.subr.mxu0 0.0
        %1548 = vmatpush1.msra.mxu0 0.0
        %1549 = vmatprep.subr.mxu0 0.0
        %1550 = vmatpush1.msra.mxu0 0.0
        %1551 = vmatprep.subr.mxu0 0.0
        %1552 = vmatpush1.msra.mxu0 0.0
        %1553 = vmatprep.subr.mxu0 0.0
        %1554 = vmatpush1.msra.mxu0 0.0
        %1555 = vmatprep.subr.mxu0 0.0
        %1556 = vmatpush1.msra.mxu0 %v1520
        %1557 = vmatprep.subr.mxu0 0.0
        %1558 = vmatpush2.msra.mxu0 0.0
        %1559 = vmatprep.subr.mxu0 0.0
        %1560 = vmatpush2.msra.mxu0 0.0
        %1561 = vmatprep.subr.mxu0 0.0
        %1562 = vmatpush2.msra.mxu0 0.0
        %1563 = vmatprep.subr.mxu0 0.0
        %1564 = vmatpush2.msra.mxu0 0.0
        %1565 = vmatprep.subr.mxu0 0.0
        %1566 = vmatpush2.msra.mxu0 0.0
        %1567 = vmatprep.subr.mxu0 0.0
        %1568 = vmatpush2.msra.mxu0 0.0
        %1569 = vmatprep.subr.mxu0 0.0
        %1570 = vmatpush2.msra.mxu0 0.0
        %1571 = vmatprep.subr.mxu0 0.0
        %1572 = vmatpush2.msra.mxu0 0.0
        %1573 = vmatprep.subr.mxu0 0.0
        %1574 = vmatpush2.msra.mxu0 0.0
        %1575 = vmatprep.subr.mxu0 0.0
        %1576 = vmatpush2.msra.mxu0 0.0
        %1577 = vmatprep.subr.mxu0 0.0
        %1578 = vmatpush2.msra.mxu0 0.0
        %1579 = vmatprep.subr.mxu0 0.0
        %1580 = vmatpush2.msra.mxu0 0.0
        %1581 = vmatprep.subr.mxu0 0.0
        %1582 = vmatpush2.msra.mxu0 0.0
        %1583 = vmatprep.subr.mxu0 0.0
        %1584 = vmatpush2.msra.mxu0 0.0
        %1585 = vmatprep.subr.mxu0 0.0
        %1586 = vmatpush2.msra.mxu0 0.0
        %1587 = vmatprep.subr.mxu0 0.0
        %1588 = vmatpush2.msra.mxu0 0.0
        %1589 = vmatprep.mubr.f32.mxu0 0.0
        %1590 = vmatmul.mubr.f32.gmra.mxu0 %v1523
        %v1591 = vpop.f32.mrf.mxu0
        %v1592 = vadd.f32 0.0, %v1591
        %v1593 = vpop.f32.mrf.mxu0
        %1594 = vdwg.mxu0
        %1596 = vrot.lane.b32.xlu0 %v1592, 64
        %v1597 = vpop.permute.xlu0 %1596
        %vm1599 = vcmask 785920
        %1600 = vst.msk [vmem:[#allocation2] sm:$0xff] %vm1599, %v1597
        %1601 = vrot.lane.b32.xlu0 %v914, 32
        %v1602 = vpop.permute.xlu0 %1601
        %1603 = vrot.lane.b32.xlu0 %v1000, 32
        %v1604 = vpop.permute.xlu0 %1603
        %v1605 = vsel %vm1095, %v1602, 0
        %v1607 = vsel %vm1095, %v1604, 0
        %1609 = vmatprep.subr.mxu0 0.0
        %1610 = vmatpush1.xpose.msra.mxu0 0.0
        %1611 = vmatprep.subr.mxu0 0.0
        %1612 = vmatpush1.xpose.msra.mxu0 0.0
        %1613 = vmatprep.subr.mxu0 0.0
        %1614 = vmatpush1.xpose.msra.mxu0 0.0
        %1615 = vmatprep.subr.mxu0 0.0
        %1616 = vmatpush1.xpose.msra.mxu0 0.0
        %1617 = vmatprep.subr.mxu0 0.0
        %1618 = vmatpush1.xpose.msra.mxu0 0.0
        %1619 = vmatprep.subr.mxu0 0.0
        %1620 = vmatpush1.xpose.msra.mxu0 0.0
        %1621 = vmatprep.subr.mxu0 0.0
        %1622 = vmatpush1.xpose.msra.mxu0 0.0
        %1623 = vmatprep.subr.mxu0 0.0
        %1624 = vmatpush1.xpose.msra.mxu0 0.0
        %1625 = vmatprep.subr.mxu0 0.0
        %1626 = vmatpush1.xpose.msra.mxu0 0.0
        %1627 = vmatprep.subr.mxu0 0.0
        %1628 = vmatpush1.xpose.msra.mxu0 0.0
        %1629 = vmatprep.subr.mxu0 0.0
        %1630 = vmatpush1.xpose.msra.mxu0 0.0
        %1631 = vmatprep.subr.mxu0 0.0
        %1632 = vmatpush1.xpose.msra.mxu0 0.0
        %1633 = vmatprep.subr.mxu0 0.0
        %1634 = vmatpush1.xpose.msra.mxu0 0.0
        %1635 = vmatprep.subr.mxu0 0.0
        %1636 = vmatpush1.xpose.msra.mxu0 0.0
        %1637 = vmatprep.subr.mxu0 0.0
        %1638 = vmatpush1.xpose.msra.mxu0 0.0
        %1639 = vmatprep.subr.mxu0 0.0
        %1640 = vmatpush1.xpose.msra.mxu0 %v1607
        %1641 = vmatprep.subr.mxu0 0.0
        %1642 = vmatpush2.xpose.msra.mxu0 0.0
        %1643 = vmatprep.subr.mxu0 0.0
        %1644 = vmatpush2.xpose.msra.mxu0 0.0
        %1645 = vmatprep.subr.mxu0 0.0
        %1646 = vmatpush2.xpose.msra.mxu0 0.0
        %1647 = vmatprep.subr.mxu0 0.0
        %1648 = vmatpush2.xpose.msra.mxu0 0.0
        %1649 = vmatprep.subr.mxu0 0.0
        %1650 = vmatpush2.xpose.msra.mxu0 0.0
        %1651 = vmatprep.subr.mxu0 0.0
        %1652 = vmatpush2.xpose.msra.mxu0 0.0
        %1653 = vmatprep.subr.mxu0 0.0
        %1654 = vmatpush2.xpose.msra.mxu0 0.0
        %1655 = vmatprep.subr.mxu0 0.0
        %1656 = vmatpush2.xpose.msra.mxu0 0.0
        %1657 = vmatprep.subr.mxu0 0.0
        %1658 = vmatpush2.xpose.msra.mxu0 0.0
        %1659 = vmatprep.subr.mxu0 0.0
        %1660 = vmatpush2.xpose.msra.mxu0 0.0
        %1661 = vmatprep.subr.mxu0 0.0
        %1662 = vmatpush2.xpose.msra.mxu0 0.0
        %1663 = vmatprep.subr.mxu0 0.0
        %1664 = vmatpush2.xpose.msra.mxu0 0.0
        %1665 = vmatprep.subr.mxu0 0.0
        %1666 = vmatpush2.xpose.msra.mxu0 0.0
        %1667 = vmatprep.subr.mxu0 0.0
        %1668 = vmatpush2.xpose.msra.mxu0 0.0
        %1669 = vmatprep.subr.mxu0 0.0
        %1670 = vmatpush2.xpose.msra.mxu0 0.0
        %1671 = vmatprep.subr.mxu0 0.0
        %1672 = vmatpush2.xpose.msra.mxu0 0.0
        %1673 = vmatprep.mubr.f32.mxu0 0.0
        %1674 = vmatmul.mubr.f32.gmra.mxu0 %v1605
        %v1675 = vpop.f32.mrf.mxu0
        %v1676 = vadd.f32 %v1094, %v1675
        %v1677 = vpop.f32.mrf.mxu0
        %1678 = vdwg.mxu0
        %v1679 = vsel %vm1172, %v1676, -inf
        %1680 = vmax.xlane.f32.xlu0 %v1679
        %v1681 = vpop.xlane.xlu0 %1680
        %v1682 = vsub.f32 %v1676, %v1681
        %v1683 = vmul.f32 %v1682, 1.442695
        %v1684 = vpow.pop %v1683
        %v1685 = vsel %vm1172, %v1684, 0.0
        %1686 = vadd.xlane.f32.xlu0 %v1685
        %v1687 = vpop.xlane.xlu0 %1686
        %v1688 = vrcp.pop %v1687
        %v1689 = vmul.f32 %v1684, %v1688
        %1690 = vrot.lane.b32.xlu0 %v1086, 32
        %v1691 = vpop.permute.xlu0 %1690
        %v1694 = vsel %vm1172, %v1689, 0
        %1696 = vmatprep.subr.mxu0 0.0
        %1697 = vmatpush1.msra.mxu0 0.0
        %1698 = vmatprep.subr.mxu0 0.0
        %1699 = vmatpush1.msra.mxu0 0.0
        %1700 = vmatprep.subr.mxu0 0.0
        %1701 = vmatpush1.msra.mxu0 0.0
        %1702 = vmatprep.subr.mxu0 0.0
        %1703 = vmatpush1.msra.mxu0 0.0
        %1704 = vmatprep.subr.mxu0 0.0
        %1705 = vmatpush1.msra.mxu0 0.0
        %1706 = vmatprep.subr.mxu0 0.0
        %1707 = vmatpush1.msra.mxu0 0.0
        %1708 = vmatprep.subr.mxu0 0.0
        %1709 = vmatpush1.msra.mxu0 0.0
        %1710 = vmatprep.subr.mxu0 0.0
        %1711 = vmatpush1.msra.mxu0 0.0
        %1712 = vmatprep.subr.mxu0 0.0
        %1713 = vmatpush1.msra.mxu0 0.0
        %1714 = vmatprep.subr.mxu0 0.0
        %1715 = vmatpush1.msra.mxu0 0.0
        %1716 = vmatprep.subr.mxu0 0.0
        %1717 = vmatpush1.msra.mxu0 0.0
        %1718 = vmatprep.subr.mxu0 0.0
        %1719 = vmatpush1.msra.mxu0 0.0
        %1720 = vmatprep.subr.mxu0 0.0
        %1721 = vmatpush1.msra.mxu0 0.0
        %1722 = vmatprep.subr.mxu0 0.0
        %1723 = vmatpush1.msra.mxu0 0.0
        %1724 = vmatprep.subr.mxu0 0.0
        %1725 = vmatpush1.msra.mxu0 0.0
        %1726 = vmatprep.subr.mxu0 0.0
        %1727 = vmatpush1.msra.mxu0 %v1691
        %1728 = vmatprep.subr.mxu0 0.0
        %1729 = vmatpush2.msra.mxu0 0.0
        %1730 = vmatprep.subr.mxu0 0.0
        %1731 = vmatpush2.msra.mxu0 0.0
        %1732 = vmatprep.subr.mxu0 0.0
        %1733 = vmatpush2.msra.mxu0 0.0
        %1734 = vmatprep.subr.mxu0 0.0
        %1735 = vmatpush2.msra.mxu0 0.0
        %1736 = vmatprep.subr.mxu0 0.0
        %1737 = vmatpush2.msra.mxu0 0.0
        %1738 = vmatprep.subr.mxu0 0.0
        %1739 = vmatpush2.msra.mxu0 0.0
        %1740 = vmatprep.subr.mxu0 0.0
        %1741 = vmatpush2.msra.mxu0 0.0
        %1742 = vmatprep.subr.mxu0 0.0
        %1743 = vmatpush2.msra.mxu0 0.0
        %1744 = vmatprep.subr.mxu0 0.0
        %1745 = vmatpush2.msra.mxu0 0.0
        %1746 = vmatprep.subr.mxu0 0.0
        %1747 = vmatpush2.msra.mxu0 0.0
        %1748 = vmatprep.subr.mxu0 0.0
        %1749 = vmatpush2.msra.mxu0 0.0
        %1750 = vmatprep.subr.mxu0 0.0
        %1751 = vmatpush2.msra.mxu0 0.0
        %1752 = vmatprep.subr.mxu0 0.0
        %1753 = vmatpush2.msra.mxu0 0.0
        %1754 = vmatprep.subr.mxu0 0.0
        %1755 = vmatpush2.msra.mxu0 0.0
        %1756 = vmatprep.subr.mxu0 0.0
        %1757 = vmatpush2.msra.mxu0 0.0
        %1758 = vmatprep.subr.mxu0 0.0
        %1759 = vmatpush2.msra.mxu0 0.0
        %1760 = vmatprep.mubr.f32.mxu0 0.0
        %1761 = vmatmul.mubr.f32.gmra.mxu0 %v1694
        %v1762 = vpop.f32.mrf.mxu0
        %v1763 = vadd.f32 0.0, %v1762
        %v1764 = vpop.f32.mrf.mxu0
        %1765 = vdwg.mxu0
        %1767 = vrot.lane.b32.xlu0 %v1763, 96
        %v1768 = vpop.permute.xlu0 %1767
        %vm1770 = vcmask 1048320
        %1771 = vst.msk [vmem:[#allocation2] sm:$0xff] %vm1770, %v1768
        %v1772 = vld [vmem:[#allocation2] sm:$0xff]
        %v1773 = vld [vmem:[%s689] sm:$0xff]
        %v1774 = vld [vmem:[%s689 + $0x8] sm:$0xff]
        %v1775 = vld [vmem:[%s689 + $0x10] sm:$0xff]
        %v1776 = vld [vmem:[%s689 + $0x18] sm:$0xff]
        %v1777 = vld [vmem:[%s689 + $0x20] sm:$0xff]
        %v1778 = vld [vmem:[%s689 + $0x28] sm:$0xff]
        %v1779 = vld [vmem:[%s689 + $0x30] sm:$0xff]
        %v1780 = vld [vmem:[%s689 + $0x38] sm:$0xff]
        %v1781 = vld [vmem:[%s689 + $0x40] sm:$0xff]
        %v1782 = vld [vmem:[%s689 + $0x48] sm:$0xff]
        %v1783 = vld [vmem:[%s689 + $0x50] sm:$0xff]
        %v1784 = vld [vmem:[%s689 + $0x58] sm:$0xff]
        %v1785 = vld [vmem:[%s689 + $0x60] sm:$0xff]
        %v1786 = vld [vmem:[%s689 + $0x68] sm:$0xff]
        %v1787 = vld [vmem:[%s689 + $0x70] sm:$0xff]
        %v1788 = vld [vmem:[%s689 + $0x78] sm:$0xff]
        %v1789 = vld [vmem:[%s805] sm:$0x1]
        %v1791 = vlaneseq
        %v1792 = vshrl.u32 %v1791, 7
        %v1793 = vsub.s32 0, %v1792
        %v1794 = vrot.slane %v1789, %v1793
        %1796 = vmatprep.subr.mxu0 0.0
        %1797 = vmatpush1.msra.mxu0 %v1788
        %1798 = vmatprep.subr.mxu0 0.0
        %1799 = vmatpush1.msra.mxu0 %v1787
        %1800 = vmatprep.subr.mxu0 0.0
        %1801 = vmatpush1.msra.mxu0 %v1786
        %1802 = vmatprep.subr.mxu0 0.0
        %1803 = vmatpush1.msra.mxu0 %v1785
        %1804 = vmatprep.subr.mxu0 0.0
        %1805 = vmatpush1.msra.mxu0 %v1784
        %1806 = vmatprep.subr.mxu0 0.0
        %1807 = vmatpush1.msra.mxu0 %v1783
        %1808 = vmatprep.subr.mxu0 0.0
        %1809 = vmatpush1.msra.mxu0 %v1782
        %1810 = vmatprep.subr.mxu0 0.0
        %1811 = vmatpush1.msra.mxu0 %v1781
        %1812 = vmatprep.subr.mxu0 0.0
        %1813 = vmatpush1.msra.mxu0 %v1780
        %1814 = vmatprep.subr.mxu0 0.0
        %1815 = vmatpush1.msra.mxu0 %v1779
        %1816 = vmatprep.subr.mxu0 0.0
        %1817 = vmatpush1.msra.mxu0 %v1778
        %1818 = vmatprep.subr.mxu0 0.0
        %1819 = vmatpush1.msra.mxu0 %v1777
        %1820 = vmatprep.subr.mxu0 0.0
        %1821 = vmatpush1.msra.mxu0 %v1776
        %1822 = vmatprep.subr.mxu0 0.0
        %1823 = vmatpush1.msra.mxu0 %v1775
        %1824 = vmatprep.subr.mxu0 0.0
        %1825 = vmatpush1.msra.mxu0 %v1774
        %1826 = vmatprep.subr.mxu0 0.0
        %1827 = vmatpush1.msra.mxu0 %v1773
        %1828 = vmatprep.subr.mxu0 0.0
        %1829 = vmatpush2.msra.mxu0 0.0
        %1830 = vmatprep.subr.mxu0 0.0
        %1831 = vmatpush2.msra.mxu0 0.0
        %1832 = vmatprep.subr.mxu0 0.0
        %1833 = vmatpush2.msra.mxu0 0.0
        %1834 = vmatprep.subr.mxu0 0.0
        %1835 = vmatpush2.msra.mxu0 0.0
        %1836 = vmatprep.subr.mxu0 0.0
        %1837 = vmatpush2.msra.mxu0 0.0
        %1838 = vmatprep.subr.mxu0 0.0
        %1839 = vmatpush2.msra.mxu0 0.0
        %1840 = vmatprep.subr.mxu0 0.0
        %1841 = vmatpush2.msra.mxu0 0.0
        %1842 = vmatprep.subr.mxu0 0.0
        %1843 = vmatpush2.msra.mxu0 0.0
        %1844 = vmatprep.subr.mxu0 0.0
        %1845 = vmatpush2.msra.mxu0 0.0
        %1846 = vmatprep.subr.mxu0 0.0
        %1847 = vmatpush2.msra.mxu0 0.0
        %1848 = vmatprep.subr.mxu0 0.0
        %1849 = vmatpush2.msra.mxu0 0.0
        %1850 = vmatprep.subr.mxu0 0.0
        %1851 = vmatpush2.msra.mxu0 0.0
        %1852 = vmatprep.subr.mxu0 0.0
        %1853 = vmatpush2.msra.mxu0 0.0
        %1854 = vmatprep.subr.mxu0 0.0
        %1855 = vmatpush2.msra.mxu0 0.0
        %1856 = vmatprep.subr.mxu0 0.0
        %1857 = vmatpush2.msra.mxu0 0.0
        %1858 = vmatprep.subr.mxu0 0.0
        %1859 = vmatpush2.msra.mxu0 0.0
        %1860 = vmatprep.mubr.f32.mxu0 0.0
        %1861 = vmatmul.mubr.f32.gmra.mxu0 %v1772
        %v1862 = vpop.f32.mrf.mxu0
        %v1863 = vadd.f32 %v1794, %v1862
        %v1864 = vpop.f32.mrf.mxu0
        %1865 = vdwg.mxu0
        %v1866 = vadd.f32 %v1863, %v830
        %v1867 = vld [vmem:[%s808] sm:$0x1]
        %v1868 = vld [vmem:[%s811] sm:$0x1]
        %1869 = vadd.xlane.f32.xlu0 %v1866
        %v1870 = vpop.xlane.xlu0 %1869
        %v1871 = vrcp.pop 128.0
        %v1872 = vmul.f32 %v1870, %v1871
        %v1873 = vsub.f32 %v1866, %v1872
        %v1874 = vmul.f32 %v1873, %v1873
        %1875 = vadd.xlane.f32.xlu0 %v1874
        %v1876 = vpop.xlane.xlu0 %1875
        %v1877 = vmul.f32 %v1876, %v1871
        %v1878 = vadd.f32 %v1877, 1e-05
        %v1879 = vrsqrt.pop %v1878
        %v1880 = vmul.f32 %v1878, %v1879
        %vm1881 = vcmp.eq.f32.partialorder %v1878, inf
        %v1882 = vsel %vm1881, %v1878, %v1880
        %vm1883 = vcmp.eq.f32.partialorder %v1878, 0.0
        %v1884 = vand.u32 %v1878, 2147483648
        %v1885 = vsel %vm1883, %v1884, %v1882
        %v1886 = vrcp.pop %v1885
        %v1887 = vmul.f32 %v1873, %v1886
        %v1889 = vlaneseq
        %v1890 = vshrl.u32 %v1889, 7
        %v1891 = vsub.s32 0, %v1890
        %v1892 = vrot.slane %v1867, %v1891
        %v1894 = vmul.f32 %v1887, %v1892
        %v1896 = vlaneseq
        %v1897 = vshrl.u32 %v1896, 7
        %v1898 = vsub.s32 0, %v1897
        %v1899 = vrot.slane %v1868, %v1898
        %v1901 = vadd.f32 %v1894, %v1899
        %v1902 = vld [vmem:[%s698] sm:$0xff]
        %v1903 = vld [vmem:[%s698 + $0x8] sm:$0xff]
        %v1904 = vld [vmem:[%s698 + $0x10] sm:$0xff]
        %v1905 = vld [vmem:[%s698 + $0x18] sm:$0xff]
        %v1906 = vld [vmem:[%s698 + $0x20] sm:$0xff]
        %v1907 = vld [vmem:[%s698 + $0x28] sm:$0xff]
        %v1908 = vld [vmem:[%s698 + $0x30] sm:$0xff]
        %v1909 = vld [vmem:[%s698 + $0x38] sm:$0xff]
        %v1910 = vld [vmem:[%s698 + $0x40] sm:$0xff]
        %v1911 = vld [vmem:[%s698 + $0x48] sm:$0xff]
        %v1912 = vld [vmem:[%s698 + $0x50] sm:$0xff]
        %v1913 = vld [vmem:[%s698 + $0x58] sm:$0xff]
        %v1914 = vld [vmem:[%s698 + $0x60] sm:$0xff]
        %v1915 = vld [vmem:[%s698 + $0x68] sm:$0xff]
        %v1916 = vld [vmem:[%s698 + $0x70] sm:$0xff]
        %v1917 = vld [vmem:[%s698 + $0x78] sm:$0xff]
        %v1918 = vld [vmem:[%s814] sm:$0x1]
        %v1920 = vlaneseq
        %v1921 = vshrl.u32 %v1920, 7
        %v1922 = vsub.s32 0, %v1921
        %v1923 = vrot.slane %v1918, %v1922
        %1925 = vmatprep.subr.mxu0 0.0
        %1926 = vmatpush1.msra.mxu0 %v1917
        %1927 = vmatprep.subr.mxu0 0.0
        %1928 = vmatpush1.msra.mxu0 %v1916
        %1929 = vmatprep.subr.mxu0 0.0
        %1930 = vmatpush1.msra.mxu0 %v1915
        %1931 = vmatprep.subr.mxu0 0.0
        %1932 = vmatpush1.msra.mxu0 %v1914
        %1933 = vmatprep.subr.mxu0 0.0
        %1934 = vmatpush1.msra.mxu0 %v1913
        %1935 = vmatprep.subr.mxu0 0.0
        %1936 = vmatpush1.msra.mxu0 %v1912
        %1937 = vmatprep.subr.mxu0 0.0
        %1938 = vmatpush1.msra.mxu0 %v1911
        %1939 = vmatprep.subr.mxu0 0.0
        %1940 = vmatpush1.msra.mxu0 %v1910
        %1941 = vmatprep.subr.mxu0 0.0
        %1942 = vmatpush1.msra.mxu0 %v1909
        %1943 = vmatprep.subr.mxu0 0.0
        %1944 = vmatpush1.msra.mxu0 %v1908
        %1945 = vmatprep.subr.mxu0 0.0
        %1946 = vmatpush1.msra.mxu0 %v1907
        %1947 = vmatprep.subr.mxu0 0.0
        %1948 = vmatpush1.msra.mxu0 %v1906
        %1949 = vmatprep.subr.mxu0 0.0
        %1950 = vmatpush1.msra.mxu0 %v1905
        %1951 = vmatprep.subr.mxu0 0.0
        %1952 = vmatpush1.msra.mxu0 %v1904
        %1953 = vmatprep.subr.mxu0 0.0
        %1954 = vmatpush1.msra.mxu0 %v1903
        %1955 = vmatprep.subr.mxu0 0.0
        %1956 = vmatpush1.msra.mxu0 %v1902
        %1957 = vmatprep.subr.mxu0 0.0
        %1958 = vmatpush2.msra.mxu0 0.0
        %1959 = vmatprep.subr.mxu0 0.0
        %1960 = vmatpush2.msra.mxu0 0.0
        %1961 = vmatprep.subr.mxu0 0.0
        %1962 = vmatpush2.msra.mxu0 0.0
        %1963 = vmatprep.subr.mxu0 0.0
        %1964 = vmatpush2.msra.mxu0 0.0
        %1965 = vmatprep.subr.mxu0 0.0
        %1966 = vmatpush2.msra.mxu0 0.0
        %1967 = vmatprep.subr.mxu0 0.0
        %1968 = vmatpush2.msra.mxu0 0.0
        %1969 = vmatprep.subr.mxu0 0.0
        %1970 = vmatpush2.msra.mxu0 0.0
        %1971 = vmatprep.subr.mxu0 0.0
        %1972 = vmatpush2.msra.mxu0 0.0
        %1973 = vmatprep.subr.mxu0 0.0
        %1974 = vmatpush2.msra.mxu0 0.0
        %1975 = vmatprep.subr.mxu0 0.0
        %1976 = vmatpush2.msra.mxu0 0.0
        %1977 = vmatprep.subr.mxu0 0.0
        %1978 = vmatpush2.msra.mxu0 0.0
        %1979 = vmatprep.subr.mxu0 0.0
        %1980 = vmatpush2.msra.mxu0 0.0
        %1981 = vmatprep.subr.mxu0 0.0
        %1982 = vmatpush2.msra.mxu0 0.0
        %1983 = vmatprep.subr.mxu0 0.0
        %1984 = vmatpush2.msra.mxu0 0.0
        %1985 = vmatprep.subr.mxu0 0.0
        %1986 = vmatpush2.msra.mxu0 0.0
        %1987 = vmatprep.subr.mxu0 0.0
        %1988 = vmatpush2.msra.mxu0 0.0
        %1989 = vmatprep.mubr.f32.mxu0 0.0
        %1990 = vmatmul.mubr.f32.gmra.mxu0 %v1901
        %v1991 = vpop.f32.mrf.mxu0
        %v1992 = vadd.f32 %v1923, %v1991
        %v1993 = vpop.f32.mrf.mxu0
        %1994 = vdwg.mxu0
        %v1995 = vmax.f32 %v1992, 0.0
        %v1996 = vld [vmem:[%s707] sm:$0xff]
        %v1997 = vld [vmem:[%s707 + $0x8] sm:$0xff]
        %v1998 = vld [vmem:[%s707 + $0x10] sm:$0xff]
        %v1999 = vld [vmem:[%s707 + $0x18] sm:$0xff]
        %v2000 = vld [vmem:[%s707 + $0x20] sm:$0xff]
        %v2001 = vld [vmem:[%s707 + $0x28] sm:$0xff]
        %v2002 = vld [vmem:[%s707 + $0x30] sm:$0xff]
        %v2003 = vld [vmem:[%s707 + $0x38] sm:$0xff]
        %v2004 = vld [vmem:[%s707 + $0x40] sm:$0xff]
        %v2005 = vld [vmem:[%s707 + $0x48] sm:$0xff]
        %v2006 = vld [vmem:[%s707 + $0x50] sm:$0xff]
        %v2007 = vld [vmem:[%s707 + $0x58] sm:$0xff]
        %v2008 = vld [vmem:[%s707 + $0x60] sm:$0xff]
        %v2009 = vld [vmem:[%s707 + $0x68] sm:$0xff]
        %v2010 = vld [vmem:[%s707 + $0x70] sm:$0xff]
        %v2011 = vld [vmem:[%s707 + $0x78] sm:$0xff]
        %v2012 = vld [vmem:[%s817] sm:$0x1]
        %v2014 = vlaneseq
        %v2015 = vshrl.u32 %v2014, 7
        %v2016 = vsub.s32 0, %v2015
        %v2017 = vrot.slane %v2012, %v2016
        %2019 = vmatprep.subr.mxu0 0.0
        %2020 = vmatpush1.msra.mxu0 %v2011
        %2021 = vmatprep.subr.mxu0 0.0
        %2022 = vmatpush1.msra.mxu0 %v2010
        %2023 = vmatprep.subr.mxu0 0.0
        %2024 = vmatpush1.msra.mxu0 %v2009
        %2025 = vmatprep.subr.mxu0 0.0
        %2026 = vmatpush1.msra.mxu0 %v2008
        %2027 = vmatprep.subr.mxu0 0.0
        %2028 = vmatpush1.msra.mxu0 %v2007
        %2029 = vmatprep.subr.mxu0 0.0
        %2030 = vmatpush1.msra.mxu0 %v2006
        %2031 = vmatprep.subr.mxu0 0.0
        %2032 = vmatpush1.msra.mxu0 %v2005
        %2033 = vmatprep.subr.mxu0 0.0
        %2034 = vmatpush1.msra.mxu0 %v2004
        %2035 = vmatprep.subr.mxu0 0.0
        %2036 = vmatpush1.msra.mxu0 %v2003
        %2037 = vmatprep.subr.mxu0 0.0
        %2038 = vmatpush1.msra.mxu0 %v2002
        %2039 = vmatprep.subr.mxu0 0.0
        %2040 = vmatpush1.msra.mxu0 %v2001
        %2041 = vmatprep.subr.mxu0 0.0
        %2042 = vmatpush1.msra.mxu0 %v2000
        %2043 = vmatprep.subr.mxu0 0.0
        %2044 = vmatpush1.msra.mxu0 %v1999
        %2045 = vmatprep.subr.mxu0 0.0
        %2046 = vmatpush1.msra.mxu0 %v1998
        %2047 = vmatprep.subr.mxu0 0.0
        %2048 = vmatpush1.msra.mxu0 %v1997
        %2049 = vmatprep.subr.mxu0 0.0
        %2050 = vmatpush1.msra.mxu0 %v1996
        %2051 = vmatprep.subr.mxu0 0.0
        %2052 = vmatpush2.msra.mxu0 0.0
        %2053 = vmatprep.subr.mxu0 0.0
        %2054 = vmatpush2.msra.mxu0 0.0
        %2055 = vmatprep.subr.mxu0 0.0
        %2056 = vmatpush2.msra.mxu0 0.0
        %2057 = vmatprep.subr.mxu0 0.0
        %2058 = vmatpush2.msra.mxu0 0.0
        %2059 = vmatprep.subr.mxu0 0.0
        %2060 = vmatpush2.msra.mxu0 0.0
        %2061 = vmatprep.subr.mxu0 0.0
        %2062 = vmatpush2.msra.mxu0 0.0
        %2063 = vmatprep.subr.mxu0 0.0
        %2064 = vmatpush2.msra.mxu0 0.0
        %2065 = vmatprep.subr.mxu0 0.0
        %2066 = vmatpush2.msra.mxu0 0.0
        %2067 = vmatprep.subr.mxu0 0.0
        %2068 = vmatpush2.msra.mxu0 0.0
        %2069 = vmatprep.subr.mxu0 0.0
        %2070 = vmatpush2.msra.mxu0 0.0
        %2071 = vmatprep.subr.mxu0 0.0
        %2072 = vmatpush2.msra.mxu0 0.0
        %2073 = vmatprep.subr.mxu0 0.0
        %2074 = vmatpush2.msra.mxu0 0.0
        %2075 = vmatprep.subr.mxu0 0.0
        %2076 = vmatpush2.msra.mxu0 0.0
        %2077 = vmatprep.subr.mxu0 0.0
        %2078 = vmatpush2.msra.mxu0 0.0
        %2079 = vmatprep.subr.mxu0 0.0
        %2080 = vmatpush2.msra.mxu0 0.0
        %2081 = vmatprep.subr.mxu0 0.0
        %2082 = vmatpush2.msra.mxu0 0.0
        %2083 = vmatprep.mubr.f32.mxu0 0.0
        %2084 = vmatmul.mubr.f32.gmra.mxu0 %v1995
        %v2085 = vpop.f32.mrf.mxu0
        %v2086 = vadd.f32 %v2017, %v2085
        %v2087 = vpop.f32.mrf.mxu0
        %2088 = vdwg.mxu0
        %v2089 = vadd.f32 %v2086, %v1901
        %v2090 = vld [vmem:[%s820] sm:$0x1]
        %v2091 = vld [vmem:[%s823] sm:$0x1]
        %2092 = vadd.xlane.f32.xlu0 %v2089
        %v2093 = vpop.xlane.xlu0 %2092
        %v2094 = vmul.f32 %v2093, %v1871
        %v2095 = vsub.f32 %v2089, %v2094
        %v2096 = vmul.f32 %v2095, %v2095
        %2097 = vadd.xlane.f32.xlu0 %v2096
        %v2098 = vpop.xlane.xlu0 %2097
        %v2099 = vmul.f32 %v2098, %v1871
        %v2100 = vadd.f32 %v2099, 1e-05
        %v2101 = vrsqrt.pop %v2100
        %v2102 = vmul.f32 %v2100, %v2101
        %vm2103 = vcmp.eq.f32.partialorder %v2100, inf
        %v2104 = vsel %vm2103, %v2100, %v2102
        %vm2105 = vcmp.eq.f32.partialorder %v2100, 0.0
        %v2106 = vand.u32 %v2100, 2147483648
        %v2107 = vsel %vm2105, %v2106, %v2104
        %v2108 = vrcp.pop %v2107
        %v2109 = vmul.f32 %v2095, %v2108
        %v2111 = vlaneseq
        %v2112 = vshrl.u32 %v2111, 7
        %v2113 = vsub.s32 0, %v2112
        %v2114 = vrot.slane %v2090, %v2113
        %v2116 = vmul.f32 %v2109, %v2114
        %v2118 = vlaneseq
        %v2119 = vshrl.u32 %v2118, 7
        %v2120 = vsub.s32 0, %v2119
        %v2121 = vrot.slane %v2091, %v2120
        %v2123 = vadd.f32 %v2116, %v2121
        %2124 = vst [vmem:[%s802] sm:$0xff] %v2123
        %s2125 = sand.u32 %s424, 1
        %s2126 = scalar_lea.sflag [#allocation5], %s2125
        %s2127 = sand.u32 %s424, 1
        %s2128 = smul.addr %s2127, 8
        %s2129 = scalar_lea.vmem [#allocation15], %s2128
        // Predicated region
        $region109: #{tpu_custom_call.1} parent=75 // pred_check
          %p2130 = pneg %p434
        $region110: #{tpu_custom_call.1} parent=75 // pred_check_branch
          %2132 = sbr.rel (%p2130) target = $region112
        $region111: #{tpu_custom_call.1} parent=75 // pred_region
          %s2134 = ssub.s32 128, 128
          %2135 = vsyncadd %s2126, %s2134
          %s2136 = smul.addr %s44, 128
          %s2137 = scalar_lea.hbm %s14, %s2136
          %s2139 = sshll.u32 %s2129, 4
          %s2140 = int_to_ptr.vmem [resolvable:$true] %s2139
          %2142 = dma.vmem_to_hbm [thread:$0]  %s2140, 128, %s2137, %s2126
        $region112: #{tpu_custom_call.1} parent=75 // pred_fallthru
          _
      $region76: #{tpu_custom_call.1} parent=5 // pred_fallthru
        _
      %p2143 = scmp.le.s32.totalorder 2, %s35
      // Predicated region
      $region113: #{tpu_custom_call.1} parent=5 // pred_check
        %p2144 = pneg %p2143
      $region114: #{tpu_custom_call.1} parent=5 // pred_check_branch
        %2146 = sbr.rel (%p2144) target = $region116
      $region115: #{tpu_custom_call.1} parent=5 // pred_region
        %s2147 = ssub.s32 %s35, 2
        // Predicated region
        $region117: #{tpu_custom_call.1} parent=115 // pred_check
          %p2148 = pneg %p440
        $region118: #{tpu_custom_call.1} parent=115 // pred_check_branch
          %2150 = sbr.rel (%p2148) target = $region120
        $region119: #{tpu_custom_call.1} parent=115 // pred_region
          %s2151 = sand.u32 %s425, 1
          %s2152 = scalar_lea.sflag [#allocation5], %s2151
          %s2153 = sand.u32 %s425, 1
          %s2154 = smul.addr %s2153, 8
          %s2155 = scalar_lea.vmem [#allocation15], %s2154
          %2156 = dma.done %s2152, 128
        $region120: #{tpu_custom_call.1} parent=115 // pred_fallthru
          _
      $region116: #{tpu_custom_call.1} parent=5 // pred_fallthru
        _
    $region6: #{tpu_custom_call.1} parent=1 // loop_footer
      %s39 = sadd.s32 1, %s35
    $region7: #{tpu_custom_call.1} parent=1 // loop_footer_branch
      %34 = sbr.rel target = $region3
    $region8: #{tpu_custom_call.1} parent=1 // loop_exit
      _
    %2157 = vsyncpa [#allocation4], 1
    %s2158 = scalar_lea.sflag [#allocation4], 1
    %2159 = vsyncpa %s2158, 1
    %2160 = vsyncpa [#allocation7], 1
    %s2161 = scalar_lea.sflag [#allocation7], 1
    %2162 = vsyncpa %s2161, 1
    %2163 = vsyncpa [#allocation10], 1
    %s2164 = scalar_lea.sflag [#allocation10], 1
    %2165 = vsyncpa %s2164, 1
    %2166 = vsyncpa [#allocation13], 1
    %s2167 = scalar_lea.sflag [#allocation13], 1
    %2168 = vsyncpa %s2167, 1
    %2169 = vsyncpa [#allocation5], 1
    %s2170 = scalar_lea.sflag [#allocation5], 1
    %2171 = vsyncpa %s2170, 1

</llo_original>
